<compile_context>
chip_gen: v7x
topology: tpu7x:2x2x1
jax: 0.10.0
libtpu: 0.0.40
codegen_flags: <defaults>
</compile_context>

<pallas_src>
import jax
import jax.numpy as jnp
from jax.experimental import pallas as pl
from jax.experimental.pallas import tpu as pltpu

W0 = 30.0  # SIREN sine frequency (used for all sine layers)


def _merge_siren_kernel(coords_ref,
                        w1_ref, b1_ref,
                        w2_ref, b2_ref,
                        w3_ref, b3_ref,
                        out_ref):
    # coords_ref : (tn, d_in)           one N-tile of query coordinates
    # w1_ref     : (d_in, K*H)          layer-1 weights, K INRs packed along lanes
    # w2_ref     : (K*H, K*H)           layer-2 weights, block-diagonal
    # w3_ref     : (K*H, K*C)           layer-3 weights, block-diagonal
    # b*_ref     : (1, K*H) / (1, K*C)  packed biases
    # out_ref    : (tn, K*C)            lane-packed outputs of all K INRs
    x = coords_ref[...].astype(jnp.float32)            # (tn, d_in)
    w1 = w1_ref[...]                                    # (d_in, K*H)
    b1 = b1_ref[...]                                    # (1, K*H)

    # Layer 1 on the VPU: contraction length d_in (=2) would leave the MXU at
    # ~1% utilization, so use statically-unrolled broadcast FMAs instead.
    d_in = x.shape[1]
    pre = jnp.broadcast_to(b1, (x.shape[0], b1.shape[1]))
    for i in range(d_in):
        pre = pre + x[:, i:i + 1] * w1[i:i + 1, :]
    h = jnp.sin(W0 * pre)                               # (tn, K*H) lane-dense

    # Layers 2 & 3: all K INRs fused into one block-diagonal MXU matmul each.
    h = jnp.sin(W0 * (jnp.dot(h, w2_ref[...],
                              preferred_element_type=jnp.float32) + b2_ref[...]))
    out = jnp.dot(h, w3_ref[...],
                  preferred_element_type=jnp.float32) + b3_ref[...]   # (tn, K*C)
    out_ref[...] = out.astype(out_ref.dtype)


def _pack_params(params):
    """Pack the stacked per-INR params into lane-dense / block-diagonal form."""
    w1, b1 = params["w1"], params["b1"]
    w2, b2 = params["w2"], params["b2"]
    w3, b3 = params["w3"], params["b3"]
    K, d_in, H = w1.shape
    C = w3.shape[-1]

    # Column index = k*H + h (k-major), matching the bias reshapes below.
    w1p = jnp.transpose(w1, (1, 0, 2)).reshape(d_in, K * H)
    b1p = b1.reshape(1, K * H)
    b2p = b2.reshape(1, K * H)
    b3p = b3.reshape(1, K * C)

    w2bd = jnp.zeros((K * H, K * H), jnp.float32)
    w3bd = jnp.zeros((K * H, K * C), jnp.float32)
    for k in range(K):
        w2bd = w2bd.at[k * H:(k + 1) * H, k * H:(k + 1) * H].set(w2[k])
        w3bd = w3bd.at[k * H:(k + 1) * H, k * C:(k + 1) * C].set(w3[k])
    return w1p, b1p, w2bd, b2p, w3bd, b3p


def merge_siren_forward(coords, params, block_n=512):
    """coords: (N, d_in) f32. params: dict of stacked per-INR weights."""
    K, d_in, H = params["w1"].shape
    C = params["w3"].shape[-1]
    N = coords.shape[0]
    KH, KC = K * H, K * C

    w1p, b1p, w2bd, b2p, w3bd, b3p = _pack_params(params)

    # Single grid step at small N; tile N (marked "parallel") only when it is
    # large and divides cleanly, so weights remain resident across tiles.
    if N <= block_n or N % block_n != 0:
        block_n = N
    grid = (N // block_n,)

    out_packed = pl.pallas_call(
        _merge_siren_kernel,
        out_shape=jax.ShapeDtypeStruct((N, KC), jnp.float32),
        grid=grid,
        in_specs=[
            pl.BlockSpec((block_n, d_in), lambda i: (i, 0)),   # coords tile
            pl.BlockSpec((d_in, KH), lambda i: (0, 0)),        # W1 packed (resident)
            pl.BlockSpec((1, KH),    lambda i: (0, 0)),        # b1 packed
            pl.BlockSpec((KH, KH),   lambda i: (0, 0)),        # W2 block-diag
            pl.BlockSpec((1, KH),    lambda i: (0, 0)),        # b2 packed
            pl.BlockSpec((KH, KC),   lambda i: (0, 0)),        # W3 block-diag
            pl.BlockSpec((1, KC),    lambda i: (0, 0)),        # b3 packed
        ],
        out_specs=pl.BlockSpec((block_n, KC), lambda i: (i, 0)),
        compiler_params=pltpu.CompilerParams(
            dimension_semantics=("parallel",)),
    )(coords, w1p, b1p, w2bd, b2p, w3bd, b3p)

    # (N, K*C) lane-packed  ->  torch.cat(out_list, dim=0) layout (K*N, C).
    return out_packed.reshape(N, K, C).transpose(1, 0, 2).reshape(K * N, C)


def init_merge_siren_params(key, num_inrs, d_in, hidden, out_channels):
    """Deterministic SIREN-style init for a stack of `num_inrs` networks."""
    ks = jax.random.split(key, 6)

    def uni(k, shape, bound):
        return jax.random.uniform(k, shape, jnp.float32, -bound, bound)

    # First layer: U(-1/d_in, 1/d_in); hidden/final: U(-sqrt(6/fan_in)/w0, ...)
    w1 = uni(ks[0], (num_inrs, d_in, hidden), 1.0 / d_in)
    b1 = uni(ks[1], (num_inrs, 1, hidden), 1.0 / jnp.sqrt(d_in))
    hb = jnp.sqrt(6.0 / hidden) / W0
    w2 = uni(ks[2], (num_inrs, hidden, hidden), hb)
    b2 = uni(ks[3], (num_inrs, 1, hidden), hb)
    w3 = uni(ks[4], (num_inrs, hidden, out_channels), hb)
    b3 = uni(ks[5], (num_inrs, 1, out_channels), hb)
    return {"w1": w1, "b1": b1, "w2": w2, "b2": b2, "w3": w3, "b3": b3}


def _reference_forward(coords, params):
    """Pure-JAX reference: loop over INRs, concat along dim 0 (as in PyTorch)."""
    outs = []
    K = params["w1"].shape[0]
    for k in range(K):
        h = jnp.sin(W0 * (coords @ params["w1"][k] + params["b1"][k]))
        h = jnp.sin(W0 * (h @ params["w2"][k] + params["b2"][k]))
        outs.append(h @ params["w3"][k] + params["b3"][k])
    return jnp.concatenate(outs, axis=0)


if __name__ == "__main__":
    key = jax.random.PRNGKey(0)
    k_coords, k_params = jax.random.split(key)

    NUM_INRS = 3        # len(inrs)
    D_IN = 2            # coordinate dimension
    HIDDEN = 32
    OUT_CHANNELS = 4    # inrs[0].out_channels -> module out_channels = 3*4 = 12
    N = 64              # number of query coordinates

    coords = jax.random.uniform(k_coords, (N, D_IN), jnp.float32, -1.0, 1.0)
    params = init_merge_siren_params(k_params, NUM_INRS, D_IN, HIDDEN, OUT_CHANNELS)

    out = merge_siren_forward(coords, params)
    out = jax.block_until_ready(out)

    ref = _reference_forward(coords, params)
    assert out.shape == (NUM_INRS * N, OUT_CHANNELS), out.shape
    assert jnp.allclose(out, ref, atol=2e-4, rtol=2e-4), float(jnp.max(jnp.abs(out - ref)))

    print("KERNEL_OK")
</pallas_src>

<mosaic_0001>
module attributes {stable_mosaic.version = 11 : i64} {
  func.func @_merge_siren_kernel(%arg0: i32, %arg1: memref<64x2xf32, #tpu.memory_space<vmem>>, %arg2: memref<2x96xf32, #tpu.memory_space<vmem>>, %arg3: memref<1x96xf32, #tpu.memory_space<vmem>>, %arg4: memref<96x96xf32, #tpu.memory_space<vmem>>, %arg5: memref<1x96xf32, #tpu.memory_space<vmem>>, %arg6: memref<96x12xf32, #tpu.memory_space<vmem>>, %arg7: memref<1x12xf32, #tpu.memory_space<vmem>>, %arg8: memref<64x12xf32, #tpu.memory_space<vmem>>) attributes {dimension_semantics = [#tpu.dimension_semantics<parallel>], iteration_bounds = array<i64: 1>, scalar_prefetch = 0 : i64, scratch_operands = 0 : i64, tpu.core_type = #tpu.core_type<tc>, window_params = [{transform_indices = @transform_0, window_bounds = array<i64: 64, 2>}, {pipeline_mode = #tpu.pipeline_mode<synchronous>, transform_indices = @transform_1, window_bounds = array<i64: 2, 96>}, {pipeline_mode = #tpu.pipeline_mode<synchronous>, transform_indices = @transform_2, window_bounds = array<i64: 1, 96>}, {pipeline_mode = #tpu.pipeline_mode<synchronous>, transform_indices = @transform_3, window_bounds = array<i64: 96, 96>}, {pipeline_mode = #tpu.pipeline_mode<synchronous>, transform_indices = @transform_4, window_bounds = array<i64: 1, 96>}, {pipeline_mode = #tpu.pipeline_mode<synchronous>, transform_indices = @transform_5, window_bounds = array<i64: 96, 12>}, {pipeline_mode = #tpu.pipeline_mode<synchronous>, transform_indices = @transform_6, window_bounds = array<i64: 1, 12>}, {transform_indices = @transform_7, window_bounds = array<i64: 64, 12>}]} {
    %c0 = arith.constant 0 : index
    %c0_0 = arith.constant 0 : index
    %0 = vector.load %arg1[%c0, %c0_0] : memref<64x2xf32, #tpu.memory_space<vmem>>, vector<64x2xf32>
    %c0_1 = arith.constant 0 : index
    %c0_2 = arith.constant 0 : index
    %1 = vector.load %arg2[%c0_1, %c0_2] : memref<2x96xf32, #tpu.memory_space<vmem>>, vector<2x96xf32>
    %c0_3 = arith.constant 0 : index
    %c0_4 = arith.constant 0 : index
    %2 = vector.load %arg3[%c0_3, %c0_4] : memref<1x96xf32, #tpu.memory_space<vmem>>, vector<1x96xf32>
    %3 = vector.shape_cast %2 : vector<1x96xf32> to vector<1x96xf32>
    %4 = vector.broadcast %3 : vector<1x96xf32> to vector<64x96xf32>
    %5 = vector.extract_strided_slice %0 {offsets = [0, 0], sizes = [64, 1], strides = [1, 1]} : vector<64x2xf32> to vector<64x1xf32>
    %6 = vector.extract_strided_slice %1 {offsets = [0, 0], sizes = [1, 96], strides = [1, 1]} : vector<2x96xf32> to vector<1x96xf32>
    %7 = vector.broadcast %5 : vector<64x1xf32> to vector<64x96xf32>
    %8 = vector.broadcast %6 : vector<1x96xf32> to vector<64x96xf32>
    %9 = arith.mulf %7, %8 : vector<64x96xf32>
    %10 = arith.addf %4, %9 : vector<64x96xf32>
    %11 = vector.extract_strided_slice %0 {offsets = [0, 1], sizes = [64, 1], strides = [1, 1]} : vector<64x2xf32> to vector<64x1xf32>
    %12 = vector.extract_strided_slice %1 {offsets = [1, 0], sizes = [1, 96], strides = [1, 1]} : vector<2x96xf32> to vector<1x96xf32>
    %13 = vector.broadcast %11 : vector<64x1xf32> to vector<64x96xf32>
    %14 = vector.broadcast %12 : vector<1x96xf32> to vector<64x96xf32>
    %15 = arith.mulf %13, %14 : vector<64x96xf32>
    %16 = arith.addf %10, %15 : vector<64x96xf32>
    %cst = arith.constant 3.000000e+01 : f32
    %17 = vector.broadcast %cst : f32 to vector<64x96xf32>
    %18 = arith.mulf %17, %16 : vector<64x96xf32>
    %19 = math.sin %18 : vector<64x96xf32>
    %c0_5 = arith.constant 0 : index
    %c0_6 = arith.constant 0 : index
    %20 = vector.load %arg4[%c0_5, %c0_6] : memref<96x96xf32, #tpu.memory_space<vmem>>, vector<96x96xf32>
    %cst_7 = arith.constant dense<0.000000e+00> : vector<64x96xf32>
    %21 = tpu.matmul %19, %20, %cst_7 {dimension_numbers = #tpu.dot_dimension_numbers<[1], [0], [0], [1], [0, 0, 1, 1], [], []>} : vector<64x96xf32>, vector<96x96xf32>, vector<64x96xf32> -> vector<64x96xf32>
    %c0_8 = arith.constant 0 : index
    %c0_9 = arith.constant 0 : index
    %22 = vector.load %arg5[%c0_8, %c0_9] : memref<1x96xf32, #tpu.memory_space<vmem>>, vector<1x96xf32>
    %23 = vector.broadcast %22 : vector<1x96xf32> to vector<64x96xf32>
    %24 = arith.addf %21, %23 : vector<64x96xf32>
    %cst_10 = arith.constant 3.000000e+01 : f32
    %25 = vector.broadcast %cst_10 : f32 to vector<64x96xf32>
    %26 = arith.mulf %25, %24 : vector<64x96xf32>
    %27 = math.sin %26 : vector<64x96xf32>
    %c0_11 = arith.constant 0 : index
    %c0_12 = arith.constant 0 : index
    %28 = vector.load %arg6[%c0_11, %c0_12] : memref<96x12xf32, #tpu.memory_space<vmem>>, vector<96x12xf32>
    %cst_13 = arith.constant dense<0.000000e+00> : vector<64x12xf32>
    %29 = tpu.matmul %27, %28, %cst_13 {dimension_numbers = #tpu.dot_dimension_numbers<[1], [0], [0], [1], [0, 0, 1, 1], [], []>} : vector<64x96xf32>, vector<96x12xf32>, vector<64x12xf32> -> vector<64x12xf32>
    %c0_14 = arith.constant 0 : index
    %c0_15 = arith.constant 0 : index
    %30 = vector.load %arg7[%c0_14, %c0_15] : memref<1x12xf32, #tpu.memory_space<vmem>>, vector<1x12xf32>
    %31 = vector.broadcast %30 : vector<1x12xf32> to vector<64x12xf32>
    %32 = arith.addf %29, %31 : vector<64x12xf32>
    %c0_16 = arith.constant 0 : index
    %c0_17 = arith.constant 0 : index
    %33 = vector.load %arg8[%c0_16, %c0_17] : memref<64x12xf32, #tpu.memory_space<vmem>>, vector<64x12xf32>
    tpu.vector_store %arg8[%c0_16, %c0_17], %32 {strides = array<i32>} : memref<64x12xf32, #tpu.memory_space<vmem>>, vector<64x12xf32>,
    return
  }
  func.func @transform_0(%arg0: i32) -> (i32, i32) {
    %c0_i32 = arith.constant 0 : i32
    %c0_i32_0 = arith.constant 0 : i32
    return %arg0, %c0_i32 : i32, i32
  }
  func.func @transform_1(%arg0: i32) -> (i32, i32) {
    %c0_i32 = arith.constant 0 : i32
    %c0_i32_0 = arith.constant 0 : i32
    %c0_i32_1 = arith.constant 0 : i32
    return %c0_i32, %c0_i32_0 : i32, i32
  }
  func.func @transform_2(%arg0: i32) -> (i32, i32) {
    %c0_i32 = arith.constant 0 : i32
    %c0_i32_0 = arith.constant 0 : i32
    %c0_i32_1 = arith.constant 0 : i32
    return %c0_i32, %c0_i32_0 : i32, i32
  }
  func.func @transform_3(%arg0: i32) -> (i32, i32) {
    %c0_i32 = arith.constant 0 : i32
    %c0_i32_0 = arith.constant 0 : i32
    %c0_i32_1 = arith.constant 0 : i32
    return %c0_i32, %c0_i32_0 : i32, i32
  }
  func.func @transform_4(%arg0: i32) -> (i32, i32) {
    %c0_i32 = arith.constant 0 : i32
    %c0_i32_0 = arith.constant 0 : i32
    %c0_i32_1 = arith.constant 0 : i32
    return %c0_i32, %c0_i32_0 : i32, i32
  }
  func.func @transform_5(%arg0: i32) -> (i32, i32) {
    %c0_i32 = arith.constant 0 : i32
    %c0_i32_0 = arith.constant 0 : i32
    %c0_i32_1 = arith.constant 0 : i32
    return %c0_i32, %c0_i32_0 : i32, i32
  }
  func.func @transform_6(%arg0: i32) -> (i32, i32) {
    %c0_i32 = arith.constant 0 : i32
    %c0_i32_0 = arith.constant 0 : i32
    %c0_i32_1 = arith.constant 0 : i32
    return %c0_i32, %c0_i32_0 : i32, i32
  }
  func.func @transform_7(%arg0: i32) -> (i32, i32) {
    %c0_i32 = arith.constant 0 : i32
    %c0_i32_0 = arith.constant 0 : i32
    return %arg0, %c0_i32 : i32, i32
  }
}

</mosaic_0001>

<llo_original>
// kernel: tpu_custom_call.1
$region0: #{tpu_custom_call.1}
  #allocation0 [shape = 'u32[]', space=smem, size = 0x4, offset = 0x4, fixed_abs, tag = 'smem constant byte address 0x4 - core index']
  #allocation1 [shape = 'u32[144,128]{1,0:T(1,128)}', space=vmem, size = 0x12000, scoped, tag = 'internal scratch']
  %s0 = inlined_call_operand.vmem [shape: f32[64,2], index: 0, kind: input, shape index: {}]
  %s1 = inlined_call_operand.vmem [shape: f32[2,96], index: 1, kind: input, shape index: {}]
  %s2 = inlined_call_operand.vmem [shape: f32[1,96], index: 2, kind: input, shape index: {}]
  %s3 = inlined_call_operand.vmem [shape: f32[96,96], index: 3, kind: input, shape index: {}]
  %s4 = inlined_call_operand.vmem [shape: f32[1,96], index: 4, kind: input, shape index: {}]
  %s5 = inlined_call_operand.vmem [shape: f32[96,12], index: 5, kind: input, shape index: {}]
  %s6 = inlined_call_operand.vmem [shape: f32[1,12], index: 6, kind: input, shape index: {}]
  %s7 = inlined_call_operand.vmem [shape: f32[64,12], index: 7, kind: output, shape index: {}]
  %s8 = sld [smem:[#allocation0]]
  $region38: #{tpu_custom_call.1} parent=0
    _
  %s10 = ssub.s32 1, %s8
  %s11 = scalar_select 0, %s10, %s8
  // Predicated region
  $region2: #{tpu_custom_call.1} parent=0 // pred_check
    _
  $region3: #{tpu_custom_call.1} parent=0 // pred_check_branch
    %13 = sbr.rel (0) target = $region5
  $region4: #{tpu_custom_call.1} parent=0 // pred_region
    _
  $region5: #{tpu_custom_call.1} parent=0 // pred_fallthru
    _
  // Predicated region
  $region6: #{tpu_custom_call.1} parent=0 // pred_check
    _
  $region7: #{tpu_custom_call.1} parent=0 // pred_check_branch
    %15 = sbr.rel (0) target = $region9
  $region8: #{tpu_custom_call.1} parent=0 // pred_region
    _
  $region9: #{tpu_custom_call.1} parent=0 // pred_fallthru
    _
  // Predicated region
  $region10: #{tpu_custom_call.1} parent=0 // pred_check
    _
  $region11: #{tpu_custom_call.1} parent=0 // pred_check_branch
    %17 = sbr.rel (0) target = $region13
  $region12: #{tpu_custom_call.1} parent=0 // pred_region
    _
  $region13: #{tpu_custom_call.1} parent=0 // pred_fallthru
    _
  // Predicated region
  $region14: #{tpu_custom_call.1} parent=0 // pred_check
    _
  $region15: #{tpu_custom_call.1} parent=0 // pred_check_branch
    %19 = sbr.rel (0) target = $region17
  $region16: #{tpu_custom_call.1} parent=0 // pred_region
    _
  $region17: #{tpu_custom_call.1} parent=0 // pred_fallthru
    _
  // Predicated region
  $region18: #{tpu_custom_call.1} parent=0 // pred_check
    _
  $region19: #{tpu_custom_call.1} parent=0 // pred_check_branch
    %21 = sbr.rel (0) target = $region21
  $region20: #{tpu_custom_call.1} parent=0 // pred_region
    _
  $region21: #{tpu_custom_call.1} parent=0 // pred_fallthru
    _
  // Predicated region
  $region22: #{tpu_custom_call.1} parent=0 // pred_check
    _
  $region23: #{tpu_custom_call.1} parent=0 // pred_check_branch
    %23 = sbr.rel (0) target = $region25
  $region24: #{tpu_custom_call.1} parent=0 // pred_region
    _
  $region25: #{tpu_custom_call.1} parent=0 // pred_fallthru
    _
  // Predicated region
  $region26: #{tpu_custom_call.1} parent=0 // pred_check
    _
  $region27: #{tpu_custom_call.1} parent=0 // pred_check_branch
    %25 = sbr.rel (0) target = $region29
  $region28: #{tpu_custom_call.1} parent=0 // pred_region
    _
  $region29: #{tpu_custom_call.1} parent=0 // pred_fallthru
    _
  %v26 = vld [vmem:[%s0] sm:$0xff]
  %v27 = vld [vmem:[%s0 + $0x8] sm:$0xff]
  %v28 = vld [vmem:[%s0 + $0x10] sm:$0xff]
  %v29 = vld [vmem:[%s0 + $0x18] sm:$0xff]
  %v30 = vld [vmem:[%s0 + $0x20] sm:$0xff]
  %v31 = vld [vmem:[%s0 + $0x28] sm:$0xff]
  %v32 = vld [vmem:[%s0 + $0x30] sm:$0xff]
  %v33 = vld [vmem:[%s0 + $0x38] sm:$0xff]
  %v34 = vld [vmem:[%s1] sm:$0x3]
  %v35 = vld [vmem:[%s2] sm:$0x1]
  %v37 = vlaneseq
  %v38 = vshrl.u32 %v37, 7
  %v39 = vsub.s32 0, %v38
  %v40 = vrot.slane %v35, %v39
  %43 = vset.pattern.permute.xlu0 0
  %44 = vperm.xlu0 %43, %v26
  %v45 = vpop.permute.xlu0 %44
  %48 = vset.pattern.permute.xlu0 0
  %49 = vperm.xlu0 %48, %v27
  %v50 = vpop.permute.xlu0 %49
  %53 = vset.pattern.permute.xlu0 0
  %54 = vperm.xlu0 %53, %v28
  %v55 = vpop.permute.xlu0 %54
  %58 = vset.pattern.permute.xlu0 0
  %59 = vperm.xlu0 %58, %v29
  %v60 = vpop.permute.xlu0 %59
  %63 = vset.pattern.permute.xlu0 0
  %64 = vperm.xlu0 %63, %v30
  %v65 = vpop.permute.xlu0 %64
  %68 = vset.pattern.permute.xlu0 0
  %69 = vperm.xlu0 %68, %v31
  %v70 = vpop.permute.xlu0 %69
  %73 = vset.pattern.permute.xlu0 0
  %74 = vperm.xlu0 %73, %v32
  %v75 = vpop.permute.xlu0 %74
  %78 = vset.pattern.permute.xlu0 0
  %79 = vperm.xlu0 %78, %v33
  %v80 = vpop.permute.xlu0 %79
  %v82 = vlaneseq
  %v83 = vshrl.u32 %v82, 7
  %v84 = vsub.s32 0, %v83
  %v85 = vrot.slane %v34, %v84
  %v86 = vmul.f32 %v45, %v85
  %v87 = vmul.f32 %v50, %v85
  %v88 = vmul.f32 %v55, %v85
  %v89 = vmul.f32 %v60, %v85
  %v90 = vmul.f32 %v65, %v85
  %v91 = vmul.f32 %v70, %v85
  %v92 = vmul.f32 %v75, %v85
  %v93 = vmul.f32 %v80, %v85
  %v94 = vadd.f32 %v40, %v86
  %v95 = vadd.f32 %v40, %v87
  %v96 = vadd.f32 %v40, %v88
  %v97 = vadd.f32 %v40, %v89
  %v98 = vadd.f32 %v40, %v90
  %v99 = vadd.f32 %v40, %v91
  %v100 = vadd.f32 %v40, %v92
  %v101 = vadd.f32 %v40, %v93
  %102 = vset.pattern.permute.xlu0 1
  %103 = vperm.xlu0 %102, %v26
  %v104 = vpop.permute.xlu0 %103
  %106 = vset.pattern.permute.xlu0 1
  %107 = vperm.xlu0 %106, %v27
  %v108 = vpop.permute.xlu0 %107
  %110 = vset.pattern.permute.xlu0 1
  %111 = vperm.xlu0 %110, %v28
  %v112 = vpop.permute.xlu0 %111
  %114 = vset.pattern.permute.xlu0 1
  %115 = vperm.xlu0 %114, %v29
  %v116 = vpop.permute.xlu0 %115
  %118 = vset.pattern.permute.xlu0 1
  %119 = vperm.xlu0 %118, %v30
  %v120 = vpop.permute.xlu0 %119
  %122 = vset.pattern.permute.xlu0 1
  %123 = vperm.xlu0 %122, %v31
  %v124 = vpop.permute.xlu0 %123
  %126 = vset.pattern.permute.xlu0 1
  %127 = vperm.xlu0 %126, %v32
  %v128 = vpop.permute.xlu0 %127
  %130 = vset.pattern.permute.xlu0 1
  %131 = vperm.xlu0 %130, %v33
  %v132 = vpop.permute.xlu0 %131
  %v134 = vlaneseq
  %v135 = vshrl.u32 %v134, 7
  %v136 = vsub.s32 1, %v135
  %v137 = vrot.slane %v34, %v136
  %v138 = vmul.f32 %v104, %v137
  %v139 = vmul.f32 %v108, %v137
  %v140 = vmul.f32 %v112, %v137
  %v141 = vmul.f32 %v116, %v137
  %v142 = vmul.f32 %v120, %v137
  %v143 = vmul.f32 %v124, %v137
  %v144 = vmul.f32 %v128, %v137
  %v145 = vmul.f32 %v132, %v137
  %v146 = vadd.f32 %v94, %v138
  %v147 = vadd.f32 %v95, %v139
  %v148 = vadd.f32 %v96, %v140
  %v149 = vadd.f32 %v97, %v141
  %v150 = vadd.f32 %v98, %v142
  %v151 = vadd.f32 %v99, %v143
  %v152 = vadd.f32 %v100, %v144
  %v153 = vadd.f32 %v101, %v145
  %v154 = vmul.f32 %v146, 30.0
  %v155 = vmul.f32 %v147, 30.0
  %v156 = vmul.f32 %v148, 30.0
  %v157 = vmul.f32 %v149, 30.0
  %v158 = vmul.f32 %v150, 30.0
  %v159 = vmul.f32 %v151, 30.0
  %v160 = vmul.f32 %v152, 30.0
  %v161 = vmul.f32 %v153, 30.0
  %v162 = vand.u32 2147483647, %v154
  %vm163 = vcmp.le.f32.partialorder %v162, 0.7853982
  %vm164 = vcmp.lt.s32.totalorder %v154, 0
  %v165 = vand.u32 %v154, 2139095040
  %v166 = vshrl.u32 %v165, 23
  %v167 = vsub.s32 %v166, 127
  %v168 = vand.u32 2147483647, %v154
  %v169 = vand.u32 %v168, 8388607
  %v170 = vor.u32 %v169, 8388608
  %v171 = vsub.s32 0, %v170
  %v172 = vadd.s32 %v167, 1
  %vm173 = vcmp.gt.s32.totalorder %v172, 0
  %v174 = vsel %vm173, %v172, 0
  %v175 = vshrl.u32 %v174, 5
  %v176 = vand.u32 %v174, 31
  %v177 = vsub.s32 32, %v176
  %v178 = vshrl.u32 683565275, %v177
  %v179 = vshll.u32 683565275, %v176
  %v180 = vshrl.u32 2475754826, %v177
  %v181 = vor.u32 %v179, %v180
  %v182 = vshll.u32 2475754826, %v176
  %v183 = vshrl.u32 2131351028, %v177
  %v184 = vor.u32 %v182, %v183
  %v185 = vshll.u32 2131351028, %v176
  %v186 = vshrl.u32 2102212464, %v177
  %v187 = vor.u32 %v185, %v186
  %v188 = vshll.u32 2102212464, %v176
  %v189 = vshrl.u32 920167782, %v177
  %v190 = vor.u32 %v188, %v189
  %v191 = vshll.u32 920167782, %v176
  %v192 = vshrl.u32 1326507024, %v177
  %v193 = vor.u32 %v191, %v192
  %vm194 = vcmp.lt.s32.totalorder %v175, 1
  %vm195 = vcmp.lt.s32.totalorder %v175, 2
  %vm196 = vcmp.lt.s32.totalorder %v175, 3
  %vm197 = vcmp.lt.s32.totalorder %v175, 4
  %v198 = vsel %vm194, %v178, %v181
  %v199 = vsel %vm197, %v187, 2102212464
  %v200 = vsel %vm196, %v184, %v199
  %v201 = vsel %vm195, %v198, %v200
  %v202 = vsel %vm194, %v181, %v184
  %v203 = vsel %vm197, %v190, 920167782
  %v204 = vsel %vm196, %v187, %v203
  %v205 = vsel %vm195, %v202, %v204
  %v206 = vsel %vm194, %v184, %v187
  %v207 = vsel %vm197, %v193, 1326507024
  %v208 = vsel %vm196, %v190, %v207
  %v209 = vsel %vm195, %v206, %v208
  %v210 = vshll.u32 %v170, 8
  %v211 = vmul.u32.u64.compose %v210, %v209
  %v212 = vextract.low.u32 %v211
  %v213 = vextract.high.u32 %v211
  %v214 = vmul.u32.u64.compose %v210, %v205
  %v215 = vextract.low.u32 %v214
  %v216 = vextract.high.u32 %v214
  %v217 = vmul.u32 %v210, %v201
  %v218 = vadd.s32 %v213, %v215
  %vm219 = vc.u32 %v213, %v215
  %v220 = vadd.s32 %v216, 1
  %v221 = vsel %vm219, %v220, %v216
  %v222 = vadd.s32 %v217, %v221
  %v223 = vadd.s32 %v222, 536870912
  %v224 = vshrl.u32 %v223, 30
  %v225 = vshll.u32 %v224, 30
  %v226 = vsub.s32 %v222, %v225
  %vm227 = vcmp.lt.s32.totalorder %v226, 0
  %v228 = vsub.s32 0, %v226
  %v229 = vsel %vm227, %v228, %v226
  %v230 = vclz %v229
  %v231 = vsub.s32 %v230, 2
  %vm232 = vcmp.gt.s32.totalorder 0, %v231
  %v233 = vsel %vm232, 0, %v231
  %v234 = vsub.s32 32, %v233
  %v235 = vshll.u32 %v226, %v233
  %v236 = vshrl.u32 %v218, %v234
  %v237 = vor.u32 %v235, %v236
  %v238 = vsub.s32 4294967266, %v233
  %v239 = vadd.s32 %v238, 127
  %v240 = vshll.u32 %v239, 23
  %v241 = vor.u32 4788187, %v240
  %v242 = vand.u32 2147483647, %v241
  %v244 = vcvt.s32.f32 %v237
  %v245 = vmul.f32 %v244, %v242
  %v246 = vxor.u32 %v245, 2147483648
  %v247 = vsel %vm164, %v246, %v245
  %v248 = vsub.s32 4, %v224
  %v249 = vsel %vm164, %v248, %v224
  %v250 = vsel %vm163, %v154, %v247
  %v251 = vsel %vm163, 0, %v249
  %v252 = vcosq.f32.pop %v250
  %v253 = vsinq.f32.pop %v250
  %vm254 = vweird.f32 %v154
  %v255 = vadd.s32 %v251, 3
  %v256 = vand.u32 %v255, 3
  %vm257 = vcmp.lt.s32.totalorder %v256, 2
  %vm258 = vcmp.eq.s32.totalorder %v256, 0
  %v259 = vxor.u32 %v253, 2147483648
  %v260 = vsel %vm258, %v252, %v259
  %vm261 = vcmp.eq.s32.totalorder %v256, 2
  %v262 = vxor.u32 %v252, 2147483648
  %v263 = vsel %vm261, %v262, %v253
  %v264 = vsel %vm257, %v260, %v263
  %v265 = vsel %vm254, nan, %v264
  %v266 = vand.u32 2147483647, %v155
  %vm267 = vcmp.le.f32.partialorder %v266, 0.7853982
  %vm268 = vcmp.lt.s32.totalorder %v155, 0
  %v269 = vand.u32 %v155, 2139095040
  %v270 = vshrl.u32 %v269, 23
  %v271 = vsub.s32 %v270, 127
  %v272 = vand.u32 2147483647, %v155
  %v273 = vand.u32 %v272, 8388607
  %v274 = vor.u32 %v273, 8388608
  %v275 = vsub.s32 0, %v274
  %v276 = vadd.s32 %v271, 1
  %vm277 = vcmp.gt.s32.totalorder %v276, 0
  %v278 = vsel %vm277, %v276, 0
  %v279 = vshrl.u32 %v278, 5
  %v280 = vand.u32 %v278, 31
  %v281 = vsub.s32 32, %v280
  %v282 = vshrl.u32 683565275, %v281
  %v283 = vshll.u32 683565275, %v280
  %v284 = vshrl.u32 2475754826, %v281
  %v285 = vor.u32 %v283, %v284
  %v286 = vshll.u32 2475754826, %v280
  %v287 = vshrl.u32 2131351028, %v281
  %v288 = vor.u32 %v286, %v287
  %v289 = vshll.u32 2131351028, %v280
  %v290 = vshrl.u32 2102212464, %v281
  %v291 = vor.u32 %v289, %v290
  %v292 = vshll.u32 2102212464, %v280
  %v293 = vshrl.u32 920167782, %v281
  %v294 = vor.u32 %v292, %v293
  %v295 = vshll.u32 920167782, %v280
  %v296 = vshrl.u32 1326507024, %v281
  %v297 = vor.u32 %v295, %v296
  %vm298 = vcmp.lt.s32.totalorder %v279, 1
  %vm299 = vcmp.lt.s32.totalorder %v279, 2
  %vm300 = vcmp.lt.s32.totalorder %v279, 3
  %vm301 = vcmp.lt.s32.totalorder %v279, 4
  %v302 = vsel %vm298, %v282, %v285
  %v303 = vsel %vm301, %v291, 2102212464
  %v304 = vsel %vm300, %v288, %v303
  %v305 = vsel %vm299, %v302, %v304
  %v306 = vsel %vm298, %v285, %v288
  %v307 = vsel %vm301, %v294, 920167782
  %v308 = vsel %vm300, %v291, %v307
  %v309 = vsel %vm299, %v306, %v308
  %v310 = vsel %vm298, %v288, %v291
  %v311 = vsel %vm301, %v297, 1326507024
  %v312 = vsel %vm300, %v294, %v311
  %v313 = vsel %vm299, %v310, %v312
  %v314 = vshll.u32 %v274, 8
  %v315 = vmul.u32.u64.compose %v314, %v313
  %v316 = vextract.low.u32 %v315
  %v317 = vextract.high.u32 %v315
  %v318 = vmul.u32.u64.compose %v314, %v309
  %v319 = vextract.low.u32 %v318
  %v320 = vextract.high.u32 %v318
  %v321 = vmul.u32 %v314, %v305
  %v322 = vadd.s32 %v317, %v319
  %vm323 = vc.u32 %v317, %v319
  %v324 = vadd.s32 %v320, 1
  %v325 = vsel %vm323, %v324, %v320
  %v326 = vadd.s32 %v321, %v325
  %v327 = vadd.s32 %v326, 536870912
  %v328 = vshrl.u32 %v327, 30
  %v329 = vshll.u32 %v328, 30
  %v330 = vsub.s32 %v326, %v329
  %vm331 = vcmp.lt.s32.totalorder %v330, 0
  %v332 = vsub.s32 0, %v330
  %v333 = vsel %vm331, %v332, %v330
  %v334 = vclz %v333
  %v335 = vsub.s32 %v334, 2
  %vm336 = vcmp.gt.s32.totalorder 0, %v335
  %v337 = vsel %vm336, 0, %v335
  %v338 = vsub.s32 32, %v337
  %v339 = vshll.u32 %v330, %v337
  %v340 = vshrl.u32 %v322, %v338
  %v341 = vor.u32 %v339, %v340
  %v342 = vsub.s32 4294967266, %v337
  %v343 = vadd.s32 %v342, 127
  %v344 = vshll.u32 %v343, 23
  %v345 = vor.u32 4788187, %v344
  %v346 = vand.u32 2147483647, %v345
  %v348 = vcvt.s32.f32 %v341
  %v349 = vmul.f32 %v348, %v346
  %v350 = vxor.u32 %v349, 2147483648
  %v351 = vsel %vm268, %v350, %v349
  %v352 = vsub.s32 4, %v328
  %v353 = vsel %vm268, %v352, %v328
  %v354 = vsel %vm267, %v155, %v351
  %v355 = vsel %vm267, 0, %v353
  %v356 = vcosq.f32.pop %v354
  %v357 = vsinq.f32.pop %v354
  %vm358 = vweird.f32 %v155
  %v359 = vadd.s32 %v355, 3
  %v360 = vand.u32 %v359, 3
  %vm361 = vcmp.lt.s32.totalorder %v360, 2
  %vm362 = vcmp.eq.s32.totalorder %v360, 0
  %v363 = vxor.u32 %v357, 2147483648
  %v364 = vsel %vm362, %v356, %v363
  %vm365 = vcmp.eq.s32.totalorder %v360, 2
  %v366 = vxor.u32 %v356, 2147483648
  %v367 = vsel %vm365, %v366, %v357
  %v368 = vsel %vm361, %v364, %v367
  %v369 = vsel %vm358, nan, %v368
  %v370 = vand.u32 2147483647, %v156
  %vm371 = vcmp.le.f32.partialorder %v370, 0.7853982
  %vm372 = vcmp.lt.s32.totalorder %v156, 0
  %v373 = vand.u32 %v156, 2139095040
  %v374 = vshrl.u32 %v373, 23
  %v375 = vsub.s32 %v374, 127
  %v376 = vand.u32 2147483647, %v156
  %v377 = vand.u32 %v376, 8388607
  %v378 = vor.u32 %v377, 8388608
  %v379 = vsub.s32 0, %v378
  %v380 = vadd.s32 %v375, 1
  %vm381 = vcmp.gt.s32.totalorder %v380, 0
  %v382 = vsel %vm381, %v380, 0
  %v383 = vshrl.u32 %v382, 5
  %v384 = vand.u32 %v382, 31
  %v385 = vsub.s32 32, %v384
  %v386 = vshrl.u32 683565275, %v385
  %v387 = vshll.u32 683565275, %v384
  %v388 = vshrl.u32 2475754826, %v385
  %v389 = vor.u32 %v387, %v388
  %v390 = vshll.u32 2475754826, %v384
  %v391 = vshrl.u32 2131351028, %v385
  %v392 = vor.u32 %v390, %v391
  %v393 = vshll.u32 2131351028, %v384
  %v394 = vshrl.u32 2102212464, %v385
  %v395 = vor.u32 %v393, %v394
  %v396 = vshll.u32 2102212464, %v384
  %v397 = vshrl.u32 920167782, %v385
  %v398 = vor.u32 %v396, %v397
  %v399 = vshll.u32 920167782, %v384
  %v400 = vshrl.u32 1326507024, %v385
  %v401 = vor.u32 %v399, %v400
  %vm402 = vcmp.lt.s32.totalorder %v383, 1
  %vm403 = vcmp.lt.s32.totalorder %v383, 2
  %vm404 = vcmp.lt.s32.totalorder %v383, 3
  %vm405 = vcmp.lt.s32.totalorder %v383, 4
  %v406 = vsel %vm402, %v386, %v389
  %v407 = vsel %vm405, %v395, 2102212464
  %v408 = vsel %vm404, %v392, %v407
  %v409 = vsel %vm403, %v406, %v408
  %v410 = vsel %vm402, %v389, %v392
  %v411 = vsel %vm405, %v398, 920167782
  %v412 = vsel %vm404, %v395, %v411
  %v413 = vsel %vm403, %v410, %v412
  %v414 = vsel %vm402, %v392, %v395
  %v415 = vsel %vm405, %v401, 1326507024
  %v416 = vsel %vm404, %v398, %v415
  %v417 = vsel %vm403, %v414, %v416
  %v418 = vshll.u32 %v378, 8
  %v419 = vmul.u32.u64.compose %v418, %v417
  %v420 = vextract.low.u32 %v419
  %v421 = vextract.high.u32 %v419
  %v422 = vmul.u32.u64.compose %v418, %v413
  %v423 = vextract.low.u32 %v422
  %v424 = vextract.high.u32 %v422
  %v425 = vmul.u32 %v418, %v409
  %v426 = vadd.s32 %v421, %v423
  %vm427 = vc.u32 %v421, %v423
  %v428 = vadd.s32 %v424, 1
  %v429 = vsel %vm427, %v428, %v424
  %v430 = vadd.s32 %v425, %v429
  %v431 = vadd.s32 %v430, 536870912
  %v432 = vshrl.u32 %v431, 30
  %v433 = vshll.u32 %v432, 30
  %v434 = vsub.s32 %v430, %v433
  %vm435 = vcmp.lt.s32.totalorder %v434, 0
  %v436 = vsub.s32 0, %v434
  %v437 = vsel %vm435, %v436, %v434
  %v438 = vclz %v437
  %v439 = vsub.s32 %v438, 2
  %vm440 = vcmp.gt.s32.totalorder 0, %v439
  %v441 = vsel %vm440, 0, %v439
  %v442 = vsub.s32 32, %v441
  %v443 = vshll.u32 %v434, %v441
  %v444 = vshrl.u32 %v426, %v442
  %v445 = vor.u32 %v443, %v444
  %v446 = vsub.s32 4294967266, %v441
  %v447 = vadd.s32 %v446, 127
  %v448 = vshll.u32 %v447, 23
  %v449 = vor.u32 4788187, %v448
  %v450 = vand.u32 2147483647, %v449
  %v452 = vcvt.s32.f32 %v445
  %v453 = vmul.f32 %v452, %v450
  %v454 = vxor.u32 %v453, 2147483648
  %v455 = vsel %vm372, %v454, %v453
  %v456 = vsub.s32 4, %v432
  %v457 = vsel %vm372, %v456, %v432
  %v458 = vsel %vm371, %v156, %v455
  %v459 = vsel %vm371, 0, %v457
  %v460 = vcosq.f32.pop %v458
  %v461 = vsinq.f32.pop %v458
  %vm462 = vweird.f32 %v156
  %v463 = vadd.s32 %v459, 3
  %v464 = vand.u32 %v463, 3
  %vm465 = vcmp.lt.s32.totalorder %v464, 2
  %vm466 = vcmp.eq.s32.totalorder %v464, 0
  %v467 = vxor.u32 %v461, 2147483648
  %v468 = vsel %vm466, %v460, %v467
  %vm469 = vcmp.eq.s32.totalorder %v464, 2
  %v470 = vxor.u32 %v460, 2147483648
  %v471 = vsel %vm469, %v470, %v461
  %v472 = vsel %vm465, %v468, %v471
  %v473 = vsel %vm462, nan, %v472
  %v474 = vand.u32 2147483647, %v157
  %vm475 = vcmp.le.f32.partialorder %v474, 0.7853982
  %vm476 = vcmp.lt.s32.totalorder %v157, 0
  %v477 = vand.u32 %v157, 2139095040
  %v478 = vshrl.u32 %v477, 23
  %v479 = vsub.s32 %v478, 127
  %v480 = vand.u32 2147483647, %v157
  %v481 = vand.u32 %v480, 8388607
  %v482 = vor.u32 %v481, 8388608
  %v483 = vsub.s32 0, %v482
  %v484 = vadd.s32 %v479, 1
  %vm485 = vcmp.gt.s32.totalorder %v484, 0
  %v486 = vsel %vm485, %v484, 0
  %v487 = vshrl.u32 %v486, 5
  %v488 = vand.u32 %v486, 31
  %v489 = vsub.s32 32, %v488
  %v490 = vshrl.u32 683565275, %v489
  %v491 = vshll.u32 683565275, %v488
  %v492 = vshrl.u32 2475754826, %v489
  %v493 = vor.u32 %v491, %v492
  %v494 = vshll.u32 2475754826, %v488
  %v495 = vshrl.u32 2131351028, %v489
  %v496 = vor.u32 %v494, %v495
  %v497 = vshll.u32 2131351028, %v488
  %v498 = vshrl.u32 2102212464, %v489
  %v499 = vor.u32 %v497, %v498
  %v500 = vshll.u32 2102212464, %v488
  %v501 = vshrl.u32 920167782, %v489
  %v502 = vor.u32 %v500, %v501
  %v503 = vshll.u32 920167782, %v488
  %v504 = vshrl.u32 1326507024, %v489
  %v505 = vor.u32 %v503, %v504
  %vm506 = vcmp.lt.s32.totalorder %v487, 1
  %vm507 = vcmp.lt.s32.totalorder %v487, 2
  %vm508 = vcmp.lt.s32.totalorder %v487, 3
  %vm509 = vcmp.lt.s32.totalorder %v487, 4
  %v510 = vsel %vm506, %v490, %v493
  %v511 = vsel %vm509, %v499, 2102212464
  %v512 = vsel %vm508, %v496, %v511
  %v513 = vsel %vm507, %v510, %v512
  %v514 = vsel %vm506, %v493, %v496
  %v515 = vsel %vm509, %v502, 920167782
  %v516 = vsel %vm508, %v499, %v515
  %v517 = vsel %vm507, %v514, %v516
  %v518 = vsel %vm506, %v496, %v499
  %v519 = vsel %vm509, %v505, 1326507024
  %v520 = vsel %vm508, %v502, %v519
  %v521 = vsel %vm507, %v518, %v520
  %v522 = vshll.u32 %v482, 8
  %v523 = vmul.u32.u64.compose %v522, %v521
  %v524 = vextract.low.u32 %v523
  %v525 = vextract.high.u32 %v523
  %v526 = vmul.u32.u64.compose %v522, %v517
  %v527 = vextract.low.u32 %v526
  %v528 = vextract.high.u32 %v526
  %v529 = vmul.u32 %v522, %v513
  %v530 = vadd.s32 %v525, %v527
  %vm531 = vc.u32 %v525, %v527
  %v532 = vadd.s32 %v528, 1
  %v533 = vsel %vm531, %v532, %v528
  %v534 = vadd.s32 %v529, %v533
  %v535 = vadd.s32 %v534, 536870912
  %v536 = vshrl.u32 %v535, 30
  %v537 = vshll.u32 %v536, 30
  %v538 = vsub.s32 %v534, %v537
  %vm539 = vcmp.lt.s32.totalorder %v538, 0
  %v540 = vsub.s32 0, %v538
  %v541 = vsel %vm539, %v540, %v538
  %v542 = vclz %v541
  %v543 = vsub.s32 %v542, 2
  %vm544 = vcmp.gt.s32.totalorder 0, %v543
  %v545 = vsel %vm544, 0, %v543
  %v546 = vsub.s32 32, %v545
  %v547 = vshll.u32 %v538, %v545
  %v548 = vshrl.u32 %v530, %v546
  %v549 = vor.u32 %v547, %v548
  %v550 = vsub.s32 4294967266, %v545
  %v551 = vadd.s32 %v550, 127
  %v552 = vshll.u32 %v551, 23
  %v553 = vor.u32 4788187, %v552
  %v554 = vand.u32 2147483647, %v553
  %v556 = vcvt.s32.f32 %v549
  %v557 = vmul.f32 %v556, %v554
  %v558 = vxor.u32 %v557, 2147483648
  %v559 = vsel %vm476, %v558, %v557
  %v560 = vsub.s32 4, %v536
  %v561 = vsel %vm476, %v560, %v536
  %v562 = vsel %vm475, %v157, %v559
  %v563 = vsel %vm475, 0, %v561
  %v564 = vcosq.f32.pop %v562
  %v565 = vsinq.f32.pop %v562
  %vm566 = vweird.f32 %v157
  %v567 = vadd.s32 %v563, 3
  %v568 = vand.u32 %v567, 3
  %vm569 = vcmp.lt.s32.totalorder %v568, 2
  %vm570 = vcmp.eq.s32.totalorder %v568, 0
  %v571 = vxor.u32 %v565, 2147483648
  %v572 = vsel %vm570, %v564, %v571
  %vm573 = vcmp.eq.s32.totalorder %v568, 2
  %v574 = vxor.u32 %v564, 2147483648
  %v575 = vsel %vm573, %v574, %v565
  %v576 = vsel %vm569, %v572, %v575
  %v577 = vsel %vm566, nan, %v576
  %v578 = vand.u32 2147483647, %v158
  %vm579 = vcmp.le.f32.partialorder %v578, 0.7853982
  %vm580 = vcmp.lt.s32.totalorder %v158, 0
  %v581 = vand.u32 %v158, 2139095040
  %v582 = vshrl.u32 %v581, 23
  %v583 = vsub.s32 %v582, 127
  %v584 = vand.u32 2147483647, %v158
  %v585 = vand.u32 %v584, 8388607
  %v586 = vor.u32 %v585, 8388608
  %v587 = vsub.s32 0, %v586
  %v588 = vadd.s32 %v583, 1
  %vm589 = vcmp.gt.s32.totalorder %v588, 0
  %v590 = vsel %vm589, %v588, 0
  %v591 = vshrl.u32 %v590, 5
  %v592 = vand.u32 %v590, 31
  %v593 = vsub.s32 32, %v592
  %v594 = vshrl.u32 683565275, %v593
  %v595 = vshll.u32 683565275, %v592
  %v596 = vshrl.u32 2475754826, %v593
  %v597 = vor.u32 %v595, %v596
  %v598 = vshll.u32 2475754826, %v592
  %v599 = vshrl.u32 2131351028, %v593
  %v600 = vor.u32 %v598, %v599
  %v601 = vshll.u32 2131351028, %v592
  %v602 = vshrl.u32 2102212464, %v593
  %v603 = vor.u32 %v601, %v602
  %v604 = vshll.u32 2102212464, %v592
  %v605 = vshrl.u32 920167782, %v593
  %v606 = vor.u32 %v604, %v605
  %v607 = vshll.u32 920167782, %v592
  %v608 = vshrl.u32 1326507024, %v593
  %v609 = vor.u32 %v607, %v608
  %vm610 = vcmp.lt.s32.totalorder %v591, 1
  %vm611 = vcmp.lt.s32.totalorder %v591, 2
  %vm612 = vcmp.lt.s32.totalorder %v591, 3
  %vm613 = vcmp.lt.s32.totalorder %v591, 4
  %v614 = vsel %vm610, %v594, %v597
  %v615 = vsel %vm613, %v603, 2102212464
  %v616 = vsel %vm612, %v600, %v615
  %v617 = vsel %vm611, %v614, %v616
  %v618 = vsel %vm610, %v597, %v600
  %v619 = vsel %vm613, %v606, 920167782
  %v620 = vsel %vm612, %v603, %v619
  %v621 = vsel %vm611, %v618, %v620
  %v622 = vsel %vm610, %v600, %v603
  %v623 = vsel %vm613, %v609, 1326507024
  %v624 = vsel %vm612, %v606, %v623
  %v625 = vsel %vm611, %v622, %v624
  %v626 = vshll.u32 %v586, 8
  %v627 = vmul.u32.u64.compose %v626, %v625
  %v628 = vextract.low.u32 %v627
  %v629 = vextract.high.u32 %v627
  %v630 = vmul.u32.u64.compose %v626, %v621
  %v631 = vextract.low.u32 %v630
  %v632 = vextract.high.u32 %v630
  %v633 = vmul.u32 %v626, %v617
  %v634 = vadd.s32 %v629, %v631
  %vm635 = vc.u32 %v629, %v631
  %v636 = vadd.s32 %v632, 1
  %v637 = vsel %vm635, %v636, %v632
  %v638 = vadd.s32 %v633, %v637
  %v639 = vadd.s32 %v638, 536870912
  %v640 = vshrl.u32 %v639, 30
  %v641 = vshll.u32 %v640, 30
  %v642 = vsub.s32 %v638, %v641
  %vm643 = vcmp.lt.s32.totalorder %v642, 0
  %v644 = vsub.s32 0, %v642
  %v645 = vsel %vm643, %v644, %v642
  %v646 = vclz %v645
  %v647 = vsub.s32 %v646, 2
  %vm648 = vcmp.gt.s32.totalorder 0, %v647
  %v649 = vsel %vm648, 0, %v647
  %v650 = vsub.s32 32, %v649
  %v651 = vshll.u32 %v642, %v649
  %v652 = vshrl.u32 %v634, %v650
  %v653 = vor.u32 %v651, %v652
  %v654 = vsub.s32 4294967266, %v649
  %v655 = vadd.s32 %v654, 127
  %v656 = vshll.u32 %v655, 23
  %v657 = vor.u32 4788187, %v656
  %v658 = vand.u32 2147483647, %v657
  %v660 = vcvt.s32.f32 %v653
  %v661 = vmul.f32 %v660, %v658
  %v662 = vxor.u32 %v661, 2147483648
  %v663 = vsel %vm580, %v662, %v661
  %v664 = vsub.s32 4, %v640
  %v665 = vsel %vm580, %v664, %v640
  %v666 = vsel %vm579, %v158, %v663
  %v667 = vsel %vm579, 0, %v665
  %v668 = vcosq.f32.pop %v666
  %v669 = vsinq.f32.pop %v666
  %vm670 = vweird.f32 %v158
  %v671 = vadd.s32 %v667, 3
  %v672 = vand.u32 %v671, 3
  %vm673 = vcmp.lt.s32.totalorder %v672, 2
  %vm674 = vcmp.eq.s32.totalorder %v672, 0
  %v675 = vxor.u32 %v669, 2147483648
  %v676 = vsel %vm674, %v668, %v675
  %vm677 = vcmp.eq.s32.totalorder %v672, 2
  %v678 = vxor.u32 %v668, 2147483648
  %v679 = vsel %vm677, %v678, %v669
  %v680 = vsel %vm673, %v676, %v679
  %v681 = vsel %vm670, nan, %v680
  %v682 = vand.u32 2147483647, %v159
  %vm683 = vcmp.le.f32.partialorder %v682, 0.7853982
  %vm684 = vcmp.lt.s32.totalorder %v159, 0
  %v685 = vand.u32 %v159, 2139095040
  %v686 = vshrl.u32 %v685, 23
  %v687 = vsub.s32 %v686, 127
  %v688 = vand.u32 2147483647, %v159
  %v689 = vand.u32 %v688, 8388607
  %v690 = vor.u32 %v689, 8388608
  %v691 = vsub.s32 0, %v690
  %v692 = vadd.s32 %v687, 1
  %vm693 = vcmp.gt.s32.totalorder %v692, 0
  %v694 = vsel %vm693, %v692, 0
  %v695 = vshrl.u32 %v694, 5
  %v696 = vand.u32 %v694, 31
  %v697 = vsub.s32 32, %v696
  %v698 = vshrl.u32 683565275, %v697
  %v699 = vshll.u32 683565275, %v696
  %v700 = vshrl.u32 2475754826, %v697
  %v701 = vor.u32 %v699, %v700
  %v702 = vshll.u32 2475754826, %v696
  %v703 = vshrl.u32 2131351028, %v697
  %v704 = vor.u32 %v702, %v703
  %v705 = vshll.u32 2131351028, %v696
  %v706 = vshrl.u32 2102212464, %v697
  %v707 = vor.u32 %v705, %v706
  %v708 = vshll.u32 2102212464, %v696
  %v709 = vshrl.u32 920167782, %v697
  %v710 = vor.u32 %v708, %v709
  %v711 = vshll.u32 920167782, %v696
  %v712 = vshrl.u32 1326507024, %v697
  %v713 = vor.u32 %v711, %v712
  %vm714 = vcmp.lt.s32.totalorder %v695, 1
  %vm715 = vcmp.lt.s32.totalorder %v695, 2
  %vm716 = vcmp.lt.s32.totalorder %v695, 3
  %vm717 = vcmp.lt.s32.totalorder %v695, 4
  %v718 = vsel %vm714, %v698, %v701
  %v719 = vsel %vm717, %v707, 2102212464
  %v720 = vsel %vm716, %v704, %v719
  %v721 = vsel %vm715, %v718, %v720
  %v722 = vsel %vm714, %v701, %v704
  %v723 = vsel %vm717, %v710, 920167782
  %v724 = vsel %vm716, %v707, %v723
  %v725 = vsel %vm715, %v722, %v724
  %v726 = vsel %vm714, %v704, %v707
  %v727 = vsel %vm717, %v713, 1326507024
  %v728 = vsel %vm716, %v710, %v727
  %v729 = vsel %vm715, %v726, %v728
  %v730 = vshll.u32 %v690, 8
  %v731 = vmul.u32.u64.compose %v730, %v729
  %v732 = vextract.low.u32 %v731
  %v733 = vextract.high.u32 %v731
  %v734 = vmul.u32.u64.compose %v730, %v725
  %v735 = vextract.low.u32 %v734
  %v736 = vextract.high.u32 %v734
  %v737 = vmul.u32 %v730, %v721
  %v738 = vadd.s32 %v733, %v735
  %vm739 = vc.u32 %v733, %v735
  %v740 = vadd.s32 %v736, 1
  %v741 = vsel %vm739, %v740, %v736
  %v742 = vadd.s32 %v737, %v741
  %v743 = vadd.s32 %v742, 536870912
  %v744 = vshrl.u32 %v743, 30
  %v745 = vshll.u32 %v744, 30
  %v746 = vsub.s32 %v742, %v745
  %vm747 = vcmp.lt.s32.totalorder %v746, 0
  %v748 = vsub.s32 0, %v746
  %v749 = vsel %vm747, %v748, %v746
  %v750 = vclz %v749
  %v751 = vsub.s32 %v750, 2
  %vm752 = vcmp.gt.s32.totalorder 0, %v751
  %v753 = vsel %vm752, 0, %v751
  %v754 = vsub.s32 32, %v753
  %v755 = vshll.u32 %v746, %v753
  %v756 = vshrl.u32 %v738, %v754
  %v757 = vor.u32 %v755, %v756
  %v758 = vsub.s32 4294967266, %v753
  %v759 = vadd.s32 %v758, 127
  %v760 = vshll.u32 %v759, 23
  %v761 = vor.u32 4788187, %v760
  %v762 = vand.u32 2147483647, %v761
  %v764 = vcvt.s32.f32 %v757
  %v765 = vmul.f32 %v764, %v762
  %v766 = vxor.u32 %v765, 2147483648
  %v767 = vsel %vm684, %v766, %v765
  %v768 = vsub.s32 4, %v744
  %v769 = vsel %vm684, %v768, %v744
  %v770 = vsel %vm683, %v159, %v767
  %v771 = vsel %vm683, 0, %v769
  %v772 = vcosq.f32.pop %v770
  %v773 = vsinq.f32.pop %v770
  %vm774 = vweird.f32 %v159
  %v775 = vadd.s32 %v771, 3
  %v776 = vand.u32 %v775, 3
  %vm777 = vcmp.lt.s32.totalorder %v776, 2
  %vm778 = vcmp.eq.s32.totalorder %v776, 0
  %v779 = vxor.u32 %v773, 2147483648
  %v780 = vsel %vm778, %v772, %v779
  %vm781 = vcmp.eq.s32.totalorder %v776, 2
  %v782 = vxor.u32 %v772, 2147483648
  %v783 = vsel %vm781, %v782, %v773
  %v784 = vsel %vm777, %v780, %v783
  %v785 = vsel %vm774, nan, %v784
  %v786 = vand.u32 2147483647, %v160
  %vm787 = vcmp.le.f32.partialorder %v786, 0.7853982
  %vm788 = vcmp.lt.s32.totalorder %v160, 0
  %v789 = vand.u32 %v160, 2139095040
  %v790 = vshrl.u32 %v789, 23
  %v791 = vsub.s32 %v790, 127
  %v792 = vand.u32 2147483647, %v160
  %v793 = vand.u32 %v792, 8388607
  %v794 = vor.u32 %v793, 8388608
  %v795 = vsub.s32 0, %v794
  %v796 = vadd.s32 %v791, 1
  %vm797 = vcmp.gt.s32.totalorder %v796, 0
  %v798 = vsel %vm797, %v796, 0
  %v799 = vshrl.u32 %v798, 5
  %v800 = vand.u32 %v798, 31
  %v801 = vsub.s32 32, %v800
  %v802 = vshrl.u32 683565275, %v801
  %v803 = vshll.u32 683565275, %v800
  %v804 = vshrl.u32 2475754826, %v801
  %v805 = vor.u32 %v803, %v804
  %v806 = vshll.u32 2475754826, %v800
  %v807 = vshrl.u32 2131351028, %v801
  %v808 = vor.u32 %v806, %v807
  %v809 = vshll.u32 2131351028, %v800
  %v810 = vshrl.u32 2102212464, %v801
  %v811 = vor.u32 %v809, %v810
  %v812 = vshll.u32 2102212464, %v800
  %v813 = vshrl.u32 920167782, %v801
  %v814 = vor.u32 %v812, %v813
  %v815 = vshll.u32 920167782, %v800
  %v816 = vshrl.u32 1326507024, %v801
  %v817 = vor.u32 %v815, %v816
  %vm818 = vcmp.lt.s32.totalorder %v799, 1
  %vm819 = vcmp.lt.s32.totalorder %v799, 2
  %vm820 = vcmp.lt.s32.totalorder %v799, 3
  %vm821 = vcmp.lt.s32.totalorder %v799, 4
  %v822 = vsel %vm818, %v802, %v805
  %v823 = vsel %vm821, %v811, 2102212464
  %v824 = vsel %vm820, %v808, %v823
  %v825 = vsel %vm819, %v822, %v824
  %v826 = vsel %vm818, %v805, %v808
  %v827 = vsel %vm821, %v814, 920167782
  %v828 = vsel %vm820, %v811, %v827
  %v829 = vsel %vm819, %v826, %v828
  %v830 = vsel %vm818, %v808, %v811
  %v831 = vsel %vm821, %v817, 1326507024
  %v832 = vsel %vm820, %v814, %v831
  %v833 = vsel %vm819, %v830, %v832
  %v834 = vshll.u32 %v794, 8
  %v835 = vmul.u32.u64.compose %v834, %v833
  %v836 = vextract.low.u32 %v835
  %v837 = vextract.high.u32 %v835
  %v838 = vmul.u32.u64.compose %v834, %v829
  %v839 = vextract.low.u32 %v838
  %v840 = vextract.high.u32 %v838
  %v841 = vmul.u32 %v834, %v825
  %v842 = vadd.s32 %v837, %v839
  %vm843 = vc.u32 %v837, %v839
  %v844 = vadd.s32 %v840, 1
  %v845 = vsel %vm843, %v844, %v840
  %v846 = vadd.s32 %v841, %v845
  %v847 = vadd.s32 %v846, 536870912
  %v848 = vshrl.u32 %v847, 30
  %v849 = vshll.u32 %v848, 30
  %v850 = vsub.s32 %v846, %v849
  %vm851 = vcmp.lt.s32.totalorder %v850, 0
  %v852 = vsub.s32 0, %v850
  %v853 = vsel %vm851, %v852, %v850
  %v854 = vclz %v853
  %v855 = vsub.s32 %v854, 2
  %vm856 = vcmp.gt.s32.totalorder 0, %v855
  %v857 = vsel %vm856, 0, %v855
  %v858 = vsub.s32 32, %v857
  %v859 = vshll.u32 %v850, %v857
  %v860 = vshrl.u32 %v842, %v858
  %v861 = vor.u32 %v859, %v860
  %v862 = vsub.s32 4294967266, %v857
  %v863 = vadd.s32 %v862, 127
  %v864 = vshll.u32 %v863, 23
  %v865 = vor.u32 4788187, %v864
  %v866 = vand.u32 2147483647, %v865
  %v868 = vcvt.s32.f32 %v861
  %v869 = vmul.f32 %v868, %v866
  %v870 = vxor.u32 %v869, 2147483648
  %v871 = vsel %vm788, %v870, %v869
  %v872 = vsub.s32 4, %v848
  %v873 = vsel %vm788, %v872, %v848
  %v874 = vsel %vm787, %v160, %v871
  %v875 = vsel %vm787, 0, %v873
  %v876 = vcosq.f32.pop %v874
  %v877 = vsinq.f32.pop %v874
  %vm878 = vweird.f32 %v160
  %v879 = vadd.s32 %v875, 3
  %v880 = vand.u32 %v879, 3
  %vm881 = vcmp.lt.s32.totalorder %v880, 2
  %vm882 = vcmp.eq.s32.totalorder %v880, 0
  %v883 = vxor.u32 %v877, 2147483648
  %v884 = vsel %vm882, %v876, %v883
  %vm885 = vcmp.eq.s32.totalorder %v880, 2
  %v886 = vxor.u32 %v876, 2147483648
  %v887 = vsel %vm885, %v886, %v877
  %v888 = vsel %vm881, %v884, %v887
  %v889 = vsel %vm878, nan, %v888
  %v890 = vand.u32 2147483647, %v161
  %vm891 = vcmp.le.f32.partialorder %v890, 0.7853982
  %vm892 = vcmp.lt.s32.totalorder %v161, 0
  %v893 = vand.u32 %v161, 2139095040
  %v894 = vshrl.u32 %v893, 23
  %v895 = vsub.s32 %v894, 127
  %v896 = vand.u32 2147483647, %v161
  %v897 = vand.u32 %v896, 8388607
  %v898 = vor.u32 %v897, 8388608
  %v899 = vsub.s32 0, %v898
  %v900 = vadd.s32 %v895, 1
  %vm901 = vcmp.gt.s32.totalorder %v900, 0
  %v902 = vsel %vm901, %v900, 0
  %v903 = vshrl.u32 %v902, 5
  %v904 = vand.u32 %v902, 31
  %v905 = vsub.s32 32, %v904
  %v906 = vshrl.u32 683565275, %v905
  %v907 = vshll.u32 683565275, %v904
  %v908 = vshrl.u32 2475754826, %v905
  %v909 = vor.u32 %v907, %v908
  %v910 = vshll.u32 2475754826, %v904
  %v911 = vshrl.u32 2131351028, %v905
  %v912 = vor.u32 %v910, %v911
  %v913 = vshll.u32 2131351028, %v904
  %v914 = vshrl.u32 2102212464, %v905
  %v915 = vor.u32 %v913, %v914
  %v916 = vshll.u32 2102212464, %v904
  %v917 = vshrl.u32 920167782, %v905
  %v918 = vor.u32 %v916, %v917
  %v919 = vshll.u32 920167782, %v904
  %v920 = vshrl.u32 1326507024, %v905
  %v921 = vor.u32 %v919, %v920
  %vm922 = vcmp.lt.s32.totalorder %v903, 1
  %vm923 = vcmp.lt.s32.totalorder %v903, 2
  %vm924 = vcmp.lt.s32.totalorder %v903, 3
  %vm925 = vcmp.lt.s32.totalorder %v903, 4
  %v926 = vsel %vm922, %v906, %v909
  %v927 = vsel %vm925, %v915, 2102212464
  %v928 = vsel %vm924, %v912, %v927
  %v929 = vsel %vm923, %v926, %v928
  %v930 = vsel %vm922, %v909, %v912
  %v931 = vsel %vm925, %v918, 920167782
  %v932 = vsel %vm924, %v915, %v931
  %v933 = vsel %vm923, %v930, %v932
  %v934 = vsel %vm922, %v912, %v915
  %v935 = vsel %vm925, %v921, 1326507024
  %v936 = vsel %vm924, %v918, %v935
  %v937 = vsel %vm923, %v934, %v936
  %v938 = vshll.u32 %v898, 8
  %v939 = vmul.u32.u64.compose %v938, %v937
  %v940 = vextract.low.u32 %v939
  %v941 = vextract.high.u32 %v939
  %v942 = vmul.u32.u64.compose %v938, %v933
  %v943 = vextract.low.u32 %v942
  %v944 = vextract.high.u32 %v942
  %v945 = vmul.u32 %v938, %v929
  %v946 = vadd.s32 %v941, %v943
  %vm947 = vc.u32 %v941, %v943
  %v948 = vadd.s32 %v944, 1
  %v949 = vsel %vm947, %v948, %v944
  %v950 = vadd.s32 %v945, %v949
  %v951 = vadd.s32 %v950, 536870912
  %v952 = vshrl.u32 %v951, 30
  %v953 = vshll.u32 %v952, 30
  %v954 = vsub.s32 %v950, %v953
  %vm955 = vcmp.lt.s32.totalorder %v954, 0
  %v956 = vsub.s32 0, %v954
  %v957 = vsel %vm955, %v956, %v954
  %v958 = vclz %v957
  %v959 = vsub.s32 %v958, 2
  %vm960 = vcmp.gt.s32.totalorder 0, %v959
  %v961 = vsel %vm960, 0, %v959
  %v962 = vsub.s32 32, %v961
  %v963 = vshll.u32 %v954, %v961
  %v964 = vshrl.u32 %v946, %v962
  %v965 = vor.u32 %v963, %v964
  %v966 = vsub.s32 4294967266, %v961
  %v967 = vadd.s32 %v966, 127
  %v968 = vshll.u32 %v967, 23
  %v969 = vor.u32 4788187, %v968
  %v970 = vand.u32 2147483647, %v969
  %v972 = vcvt.s32.f32 %v965
  %v973 = vmul.f32 %v972, %v970
  %v974 = vxor.u32 %v973, 2147483648
  %v975 = vsel %vm892, %v974, %v973
  %v976 = vsub.s32 4, %v952
  %v977 = vsel %vm892, %v976, %v952
  %v978 = vsel %vm891, %v161, %v975
  %v979 = vsel %vm891, 0, %v977
  %v980 = vcosq.f32.pop %v978
  %v981 = vsinq.f32.pop %v978
  %vm982 = vweird.f32 %v161
  %v983 = vadd.s32 %v979, 3
  %v984 = vand.u32 %v983, 3
  %vm985 = vcmp.lt.s32.totalorder %v984, 2
  %vm986 = vcmp.eq.s32.totalorder %v984, 0
  %v987 = vxor.u32 %v981, 2147483648
  %v988 = vsel %vm986, %v980, %v987
  %vm989 = vcmp.eq.s32.totalorder %v984, 2
  %v990 = vxor.u32 %v980, 2147483648
  %v991 = vsel %vm989, %v990, %v981
  %v992 = vsel %vm985, %v988, %v991
  %v993 = vsel %vm982, nan, %v992
  %v994 = vld [vmem:[%s3] sm:$0xff]
  %v995 = vld [vmem:[%s3 + $0x8] sm:$0xff]
  %v996 = vld [vmem:[%s3 + $0x10] sm:$0xff]
  %v997 = vld [vmem:[%s3 + $0x18] sm:$0xff]
  %v998 = vld [vmem:[%s3 + $0x20] sm:$0xff]
  %v999 = vld [vmem:[%s3 + $0x28] sm:$0xff]
  %v1000 = vld [vmem:[%s3 + $0x30] sm:$0xff]
  %v1001 = vld [vmem:[%s3 + $0x38] sm:$0xff]
  %v1002 = vld [vmem:[%s3 + $0x40] sm:$0xff]
  %v1003 = vld [vmem:[%s3 + $0x48] sm:$0xff]
  %v1004 = vld [vmem:[%s3 + $0x50] sm:$0xff]
  %v1005 = vld [vmem:[%s3 + $0x58] sm:$0xff]
  %v1006 = vld [vmem:[%s4] sm:$0x1]
  %v1008 = vlaneseq
  %v1009 = vshrl.u32 %v1008, 7
  %v1010 = vsub.s32 0, %v1009
  %v1011 = vrot.slane %v1006, %v1010
  %vm1013 = vcmask 785408
  %v1015 = vsel %vm1013, %v265, 0
  %v1018 = vsel %vm1013, %v369, 0
  %v1021 = vsel %vm1013, %v473, 0
  %v1024 = vsel %vm1013, %v577, 0
  %v1027 = vsel %vm1013, %v681, 0
  %v1030 = vsel %vm1013, %v785, 0
  %v1033 = vsel %vm1013, %v889, 0
  %v1036 = vsel %vm1013, %v993, 0
  %1038 = vmatprep.subr.mxu0 0.0
  %1039 = vmatpush1.msra.mxu0 %v994
  %1040 = vmatprep.subr.mxu0 0.0
  %1041 = vmatpush1.msra.mxu0 %v995
  %1042 = vmatprep.subr.mxu0 0.0
  %1043 = vmatpush1.msra.mxu0 %v996
  %1044 = vmatprep.subr.mxu0 0.0
  %1045 = vmatpush1.msra.mxu0 %v997
  %1046 = vmatprep.subr.mxu0 0.0
  %1047 = vmatpush1.msra.mxu0 %v998
  %1048 = vmatprep.subr.mxu0 0.0
  %1049 = vmatpush1.msra.mxu0 %v999
  %1050 = vmatprep.subr.mxu0 0.0
  %1051 = vmatpush1.msra.mxu0 %v1000
  %1052 = vmatprep.subr.mxu0 0.0
  %1053 = vmatpush1.msra.mxu0 %v1001
  %1054 = vmatprep.subr.mxu0 0.0
  %1055 = vmatpush1.msra.mxu0 %v1002
  %1056 = vmatprep.subr.mxu0 0.0
  %1057 = vmatpush1.msra.mxu0 %v1003
  %1058 = vmatprep.subr.mxu0 0.0
  %1059 = vmatpush1.msra.mxu0 %v1004
  %1060 = vmatprep.subr.mxu0 0.0
  %1061 = vmatpush1.msra.mxu0 %v1005
  %1062 = vmatprep.subr.mxu0 0.0
  %1063 = vmatpush1.msra.mxu0 0.0
  %1064 = vmatprep.subr.mxu0 0.0
  %1065 = vmatpush1.msra.mxu0 0.0
  %1066 = vmatprep.subr.mxu0 0.0
  %1067 = vmatpush1.msra.mxu0 0.0
  %1068 = vmatprep.subr.mxu0 0.0
  %1069 = vmatpush1.msra.mxu0 0.0
  %1070 = vmatprep.subr.mxu0 0.0
  %1071 = vmatpush1.msra.mxu0 0.0
  %1072 = vmatprep.subr.mxu0 0.0
  %1073 = vmatpush1.msra.mxu0 0.0
  %1074 = vmatprep.subr.mxu0 0.0
  %1075 = vmatpush1.msra.mxu0 0.0
  %1076 = vmatprep.subr.mxu0 0.0
  %1077 = vmatpush1.msra.mxu0 0.0
  %1078 = vmatprep.subr.mxu0 0.0
  %1079 = vmatpush1.msra.mxu0 0.0
  %1080 = vmatprep.subr.mxu0 0.0
  %1081 = vmatpush1.msra.mxu0 0.0
  %1082 = vmatprep.subr.mxu0 0.0
  %1083 = vmatpush1.msra.mxu0 0.0
  %1084 = vmatprep.subr.mxu0 0.0
  %1085 = vmatpush1.msra.mxu0 0.0
  %1086 = vmatprep.subr.mxu0 0.0
  %1087 = vmatpush1.msra.mxu0 0.0
  %1088 = vmatprep.subr.mxu0 0.0
  %1089 = vmatpush1.msra.mxu0 0.0
  %1090 = vmatprep.subr.mxu0 0.0
  %1091 = vmatpush1.msra.mxu0 0.0
  %1092 = vmatprep.subr.mxu0 0.0
  %1093 = vmatpush1.msra.mxu0 0.0
  %1094 = vmatprep.subr.mxu0 0.0
  %1095 = vmatpush1.msra.mxu0 0.0
  %1096 = vmatprep.subr.mxu0 0.0
  %1097 = vmatpush1.msra.mxu0 0.0
  %1098 = vmatprep.subr.mxu0 0.0
  %1099 = vmatpush1.msra.mxu0 0.0
  %1100 = vmatprep.subr.mxu0 0.0
  %1101 = vmatpush1.msra.mxu0 0.0
  %1102 = vmatprep.mubr.f32.mxu0 0.0
  %1103 = vmatmul.mubr.f32.gmra.mrb[0].mxu0 %v1015
  %v1104 = vpop.f32.mrb[0].mxu0
  %v1105 = vadd.f32 %v1011, %v1104
  %v1106 = vpop.f32.mrb[0].mxu0
  %1107 = vmatprep.mubr.f32.mxu0 0.0
  %1108 = vmatmul.mubr.f32.gmra.mrb[0].mxu0 %v1018
  %v1109 = vpop.f32.mrb[0].mxu0
  %v1110 = vadd.f32 %v1011, %v1109
  %v1111 = vpop.f32.mrb[0].mxu0
  %1112 = vmatprep.mubr.f32.mxu0 0.0
  %1113 = vmatmul.mubr.f32.gmra.mrb[0].mxu0 %v1021
  %v1114 = vpop.f32.mrb[0].mxu0
  %v1115 = vadd.f32 %v1011, %v1114
  %v1116 = vpop.f32.mrb[0].mxu0
  %1117 = vmatprep.mubr.f32.mxu0 0.0
  %1118 = vmatmul.mubr.f32.gmra.mrb[0].mxu0 %v1024
  %v1119 = vpop.f32.mrb[0].mxu0
  %v1120 = vadd.f32 %v1011, %v1119
  %v1121 = vpop.f32.mrb[0].mxu0
  %1122 = vmatprep.mubr.f32.mxu0 0.0
  %1123 = vmatmul.mubr.f32.gmra.mrb[0].mxu0 %v1027
  %v1124 = vpop.f32.mrb[0].mxu0
  %v1125 = vadd.f32 %v1011, %v1124
  %v1126 = vpop.f32.mrb[0].mxu0
  %1127 = vmatprep.mubr.f32.mxu0 0.0
  %1128 = vmatmul.mubr.f32.gmra.mrb[0].mxu0 %v1030
  %v1129 = vpop.f32.mrb[0].mxu0
  %v1130 = vadd.f32 %v1011, %v1129
  %v1131 = vpop.f32.mrb[0].mxu0
  %1132 = vmatprep.mubr.f32.mxu0 0.0
  %1133 = vmatmul.mubr.f32.gmra.mrb[0].mxu0 %v1033
  %v1134 = vpop.f32.mrb[0].mxu0
  %v1135 = vadd.f32 %v1011, %v1134
  %v1136 = vpop.f32.mrb[0].mxu0
  %1137 = vmatprep.mubr.f32.mxu0 0.0
  %1138 = vmatmul.mubr.f32.gmra.mrb[0].mxu0 %v1036
  %v1139 = vpop.f32.mrb[0].mxu0
  %v1140 = vadd.f32 %v1011, %v1139
  %v1141 = vpop.f32.mrb[0].mxu0
  %1142 = vdwg.mxu0
  %v1143 = vmul.f32 %v1105, 30.0
  %v1144 = vmul.f32 %v1110, 30.0
  %v1145 = vmul.f32 %v1115, 30.0
  %v1146 = vmul.f32 %v1120, 30.0
  %v1147 = vmul.f32 %v1125, 30.0
  %v1148 = vmul.f32 %v1130, 30.0
  %v1149 = vmul.f32 %v1135, 30.0
  %v1150 = vmul.f32 %v1140, 30.0
  %v1151 = vand.u32 2147483647, %v1143
  %vm1152 = vcmp.le.f32.partialorder %v1151, 0.7853982
  %vm1153 = vcmp.lt.s32.totalorder %v1143, 0
  %v1154 = vand.u32 %v1143, 2139095040
  %v1155 = vshrl.u32 %v1154, 23
  %v1156 = vsub.s32 %v1155, 127
  %v1157 = vand.u32 2147483647, %v1143
  %v1158 = vand.u32 %v1157, 8388607
  %v1159 = vor.u32 %v1158, 8388608
  %v1160 = vsub.s32 0, %v1159
  %v1161 = vadd.s32 %v1156, 1
  %vm1162 = vcmp.gt.s32.totalorder %v1161, 0
  %v1163 = vsel %vm1162, %v1161, 0
  %v1164 = vshrl.u32 %v1163, 5
  %v1165 = vand.u32 %v1163, 31
  %v1166 = vsub.s32 32, %v1165
  %v1167 = vshrl.u32 683565275, %v1166
  %v1168 = vshll.u32 683565275, %v1165
  %v1169 = vshrl.u32 2475754826, %v1166
  %v1170 = vor.u32 %v1168, %v1169
  %v1171 = vshll.u32 2475754826, %v1165
  %v1172 = vshrl.u32 2131351028, %v1166
  %v1173 = vor.u32 %v1171, %v1172
  %v1174 = vshll.u32 2131351028, %v1165
  %v1175 = vshrl.u32 2102212464, %v1166
  %v1176 = vor.u32 %v1174, %v1175
  %v1177 = vshll.u32 2102212464, %v1165
  %v1178 = vshrl.u32 920167782, %v1166
  %v1179 = vor.u32 %v1177, %v1178
  %v1180 = vshll.u32 920167782, %v1165
  %v1181 = vshrl.u32 1326507024, %v1166
  %v1182 = vor.u32 %v1180, %v1181
  %vm1183 = vcmp.lt.s32.totalorder %v1164, 1
  %vm1184 = vcmp.lt.s32.totalorder %v1164, 2
  %vm1185 = vcmp.lt.s32.totalorder %v1164, 3
  %vm1186 = vcmp.lt.s32.totalorder %v1164, 4
  %v1187 = vsel %vm1183, %v1167, %v1170
  %v1188 = vsel %vm1186, %v1176, 2102212464
  %v1189 = vsel %vm1185, %v1173, %v1188
  %v1190 = vsel %vm1184, %v1187, %v1189
  %v1191 = vsel %vm1183, %v1170, %v1173
  %v1192 = vsel %vm1186, %v1179, 920167782
  %v1193 = vsel %vm1185, %v1176, %v1192
  %v1194 = vsel %vm1184, %v1191, %v1193
  %v1195 = vsel %vm1183, %v1173, %v1176
  %v1196 = vsel %vm1186, %v1182, 1326507024
  %v1197 = vsel %vm1185, %v1179, %v1196
  %v1198 = vsel %vm1184, %v1195, %v1197
  %v1199 = vshll.u32 %v1159, 8
  %v1200 = vmul.u32.u64.compose %v1199, %v1198
  %v1201 = vextract.low.u32 %v1200
  %v1202 = vextract.high.u32 %v1200
  %v1203 = vmul.u32.u64.compose %v1199, %v1194
  %v1204 = vextract.low.u32 %v1203
  %v1205 = vextract.high.u32 %v1203
  %v1206 = vmul.u32 %v1199, %v1190
  %v1207 = vadd.s32 %v1202, %v1204
  %vm1208 = vc.u32 %v1202, %v1204
  %v1209 = vadd.s32 %v1205, 1
  %v1210 = vsel %vm1208, %v1209, %v1205
  %v1211 = vadd.s32 %v1206, %v1210
  %v1212 = vadd.s32 %v1211, 536870912
  %v1213 = vshrl.u32 %v1212, 30
  %v1214 = vshll.u32 %v1213, 30
  %v1215 = vsub.s32 %v1211, %v1214
  %vm1216 = vcmp.lt.s32.totalorder %v1215, 0
  %v1217 = vsub.s32 0, %v1215
  %v1218 = vsel %vm1216, %v1217, %v1215
  %v1219 = vclz %v1218
  %v1220 = vsub.s32 %v1219, 2
  %vm1221 = vcmp.gt.s32.totalorder 0, %v1220
  %v1222 = vsel %vm1221, 0, %v1220
  %v1223 = vsub.s32 32, %v1222
  %v1224 = vshll.u32 %v1215, %v1222
  %v1225 = vshrl.u32 %v1207, %v1223
  %v1226 = vor.u32 %v1224, %v1225
  %v1227 = vsub.s32 4294967266, %v1222
  %v1228 = vadd.s32 %v1227, 127
  %v1229 = vshll.u32 %v1228, 23
  %v1230 = vor.u32 4788187, %v1229
  %v1231 = vand.u32 2147483647, %v1230
  %v1233 = vcvt.s32.f32 %v1226
  %v1234 = vmul.f32 %v1233, %v1231
  %v1235 = vxor.u32 %v1234, 2147483648
  %v1236 = vsel %vm1153, %v1235, %v1234
  %v1237 = vsub.s32 4, %v1213
  %v1238 = vsel %vm1153, %v1237, %v1213
  %v1239 = vsel %vm1152, %v1143, %v1236
  %v1240 = vsel %vm1152, 0, %v1238
  %v1241 = vcosq.f32.pop %v1239
  %v1242 = vsinq.f32.pop %v1239
  %vm1243 = vweird.f32 %v1143
  %v1244 = vadd.s32 %v1240, 3
  %v1245 = vand.u32 %v1244, 3
  %vm1246 = vcmp.lt.s32.totalorder %v1245, 2
  %vm1247 = vcmp.eq.s32.totalorder %v1245, 0
  %v1248 = vxor.u32 %v1242, 2147483648
  %v1249 = vsel %vm1247, %v1241, %v1248
  %vm1250 = vcmp.eq.s32.totalorder %v1245, 2
  %v1251 = vxor.u32 %v1241, 2147483648
  %v1252 = vsel %vm1250, %v1251, %v1242
  %v1253 = vsel %vm1246, %v1249, %v1252
  %v1254 = vsel %vm1243, nan, %v1253
  %v1255 = vand.u32 2147483647, %v1144
  %vm1256 = vcmp.le.f32.partialorder %v1255, 0.7853982
  %vm1257 = vcmp.lt.s32.totalorder %v1144, 0
  %v1258 = vand.u32 %v1144, 2139095040
  %v1259 = vshrl.u32 %v1258, 23
  %v1260 = vsub.s32 %v1259, 127
  %v1261 = vand.u32 2147483647, %v1144
  %v1262 = vand.u32 %v1261, 8388607
  %v1263 = vor.u32 %v1262, 8388608
  %v1264 = vsub.s32 0, %v1263
  %v1265 = vadd.s32 %v1260, 1
  %vm1266 = vcmp.gt.s32.totalorder %v1265, 0
  %v1267 = vsel %vm1266, %v1265, 0
  %v1268 = vshrl.u32 %v1267, 5
  %v1269 = vand.u32 %v1267, 31
  %v1270 = vsub.s32 32, %v1269
  %v1271 = vshrl.u32 683565275, %v1270
  %v1272 = vshll.u32 683565275, %v1269
  %v1273 = vshrl.u32 2475754826, %v1270
  %v1274 = vor.u32 %v1272, %v1273
  %v1275 = vshll.u32 2475754826, %v1269
  %v1276 = vshrl.u32 2131351028, %v1270
  %v1277 = vor.u32 %v1275, %v1276
  %v1278 = vshll.u32 2131351028, %v1269
  %v1279 = vshrl.u32 2102212464, %v1270
  %v1280 = vor.u32 %v1278, %v1279
  %v1281 = vshll.u32 2102212464, %v1269
  %v1282 = vshrl.u32 920167782, %v1270
  %v1283 = vor.u32 %v1281, %v1282
  %v1284 = vshll.u32 920167782, %v1269
  %v1285 = vshrl.u32 1326507024, %v1270
  %v1286 = vor.u32 %v1284, %v1285
  %vm1287 = vcmp.lt.s32.totalorder %v1268, 1
  %vm1288 = vcmp.lt.s32.totalorder %v1268, 2
  %vm1289 = vcmp.lt.s32.totalorder %v1268, 3
  %vm1290 = vcmp.lt.s32.totalorder %v1268, 4
  %v1291 = vsel %vm1287, %v1271, %v1274
  %v1292 = vsel %vm1290, %v1280, 2102212464
  %v1293 = vsel %vm1289, %v1277, %v1292
  %v1294 = vsel %vm1288, %v1291, %v1293
  %v1295 = vsel %vm1287, %v1274, %v1277
  %v1296 = vsel %vm1290, %v1283, 920167782
  %v1297 = vsel %vm1289, %v1280, %v1296
  %v1298 = vsel %vm1288, %v1295, %v1297
  %v1299 = vsel %vm1287, %v1277, %v1280
  %v1300 = vsel %vm1290, %v1286, 1326507024
  %v1301 = vsel %vm1289, %v1283, %v1300
  %v1302 = vsel %vm1288, %v1299, %v1301
  %v1303 = vshll.u32 %v1263, 8
  %v1304 = vmul.u32.u64.compose %v1303, %v1302
  %v1305 = vextract.low.u32 %v1304
  %v1306 = vextract.high.u32 %v1304
  %v1307 = vmul.u32.u64.compose %v1303, %v1298
  %v1308 = vextract.low.u32 %v1307
  %v1309 = vextract.high.u32 %v1307
  %v1310 = vmul.u32 %v1303, %v1294
  %v1311 = vadd.s32 %v1306, %v1308
  %vm1312 = vc.u32 %v1306, %v1308
  %v1313 = vadd.s32 %v1309, 1
  %v1314 = vsel %vm1312, %v1313, %v1309
  %v1315 = vadd.s32 %v1310, %v1314
  %v1316 = vadd.s32 %v1315, 536870912
  %v1317 = vshrl.u32 %v1316, 30
  %v1318 = vshll.u32 %v1317, 30
  %v1319 = vsub.s32 %v1315, %v1318
  %vm1320 = vcmp.lt.s32.totalorder %v1319, 0
  %v1321 = vsub.s32 0, %v1319
  %v1322 = vsel %vm1320, %v1321, %v1319
  %v1323 = vclz %v1322
  %v1324 = vsub.s32 %v1323, 2
  %vm1325 = vcmp.gt.s32.totalorder 0, %v1324
  %v1326 = vsel %vm1325, 0, %v1324
  %v1327 = vsub.s32 32, %v1326
  %v1328 = vshll.u32 %v1319, %v1326
  %v1329 = vshrl.u32 %v1311, %v1327
  %v1330 = vor.u32 %v1328, %v1329
  %v1331 = vsub.s32 4294967266, %v1326
  %v1332 = vadd.s32 %v1331, 127
  %v1333 = vshll.u32 %v1332, 23
  %v1334 = vor.u32 4788187, %v1333
  %v1335 = vand.u32 2147483647, %v1334
  %v1337 = vcvt.s32.f32 %v1330
  %v1338 = vmul.f32 %v1337, %v1335
  %v1339 = vxor.u32 %v1338, 2147483648
  %v1340 = vsel %vm1257, %v1339, %v1338
  %v1341 = vsub.s32 4, %v1317
  %v1342 = vsel %vm1257, %v1341, %v1317
  %v1343 = vsel %vm1256, %v1144, %v1340
  %v1344 = vsel %vm1256, 0, %v1342
  %v1345 = vcosq.f32.pop %v1343
  %v1346 = vsinq.f32.pop %v1343
  %vm1347 = vweird.f32 %v1144
  %v1348 = vadd.s32 %v1344, 3
  %v1349 = vand.u32 %v1348, 3
  %vm1350 = vcmp.lt.s32.totalorder %v1349, 2
  %vm1351 = vcmp.eq.s32.totalorder %v1349, 0
  %v1352 = vxor.u32 %v1346, 2147483648
  %v1353 = vsel %vm1351, %v1345, %v1352
  %vm1354 = vcmp.eq.s32.totalorder %v1349, 2
  %v1355 = vxor.u32 %v1345, 2147483648
  %v1356 = vsel %vm1354, %v1355, %v1346
  %v1357 = vsel %vm1350, %v1353, %v1356
  %v1358 = vsel %vm1347, nan, %v1357
  %v1359 = vand.u32 2147483647, %v1145
  %vm1360 = vcmp.le.f32.partialorder %v1359, 0.7853982
  %vm1361 = vcmp.lt.s32.totalorder %v1145, 0
  %v1362 = vand.u32 %v1145, 2139095040
  %v1363 = vshrl.u32 %v1362, 23
  %v1364 = vsub.s32 %v1363, 127
  %v1365 = vand.u32 2147483647, %v1145
  %v1366 = vand.u32 %v1365, 8388607
  %v1367 = vor.u32 %v1366, 8388608
  %v1368 = vsub.s32 0, %v1367
  %v1369 = vadd.s32 %v1364, 1
  %vm1370 = vcmp.gt.s32.totalorder %v1369, 0
  %v1371 = vsel %vm1370, %v1369, 0
  %v1372 = vshrl.u32 %v1371, 5
  %v1373 = vand.u32 %v1371, 31
  %v1374 = vsub.s32 32, %v1373
  %v1375 = vshrl.u32 683565275, %v1374
  %v1376 = vshll.u32 683565275, %v1373
  %v1377 = vshrl.u32 2475754826, %v1374
  %v1378 = vor.u32 %v1376, %v1377
  %v1379 = vshll.u32 2475754826, %v1373
  %v1380 = vshrl.u32 2131351028, %v1374
  %v1381 = vor.u32 %v1379, %v1380
  %v1382 = vshll.u32 2131351028, %v1373
  %v1383 = vshrl.u32 2102212464, %v1374
  %v1384 = vor.u32 %v1382, %v1383
  %v1385 = vshll.u32 2102212464, %v1373
  %v1386 = vshrl.u32 920167782, %v1374
  %v1387 = vor.u32 %v1385, %v1386
  %v1388 = vshll.u32 920167782, %v1373
  %v1389 = vshrl.u32 1326507024, %v1374
  %v1390 = vor.u32 %v1388, %v1389
  %vm1391 = vcmp.lt.s32.totalorder %v1372, 1
  %vm1392 = vcmp.lt.s32.totalorder %v1372, 2
  %vm1393 = vcmp.lt.s32.totalorder %v1372, 3
  %vm1394 = vcmp.lt.s32.totalorder %v1372, 4
  %v1395 = vsel %vm1391, %v1375, %v1378
  %v1396 = vsel %vm1394, %v1384, 2102212464
  %v1397 = vsel %vm1393, %v1381, %v1396
  %v1398 = vsel %vm1392, %v1395, %v1397
  %v1399 = vsel %vm1391, %v1378, %v1381
  %v1400 = vsel %vm1394, %v1387, 920167782
  %v1401 = vsel %vm1393, %v1384, %v1400
  %v1402 = vsel %vm1392, %v1399, %v1401
  %v1403 = vsel %vm1391, %v1381, %v1384
  %v1404 = vsel %vm1394, %v1390, 1326507024
  %v1405 = vsel %vm1393, %v1387, %v1404
  %v1406 = vsel %vm1392, %v1403, %v1405
  %v1407 = vshll.u32 %v1367, 8
  %v1408 = vmul.u32.u64.compose %v1407, %v1406
  %v1409 = vextract.low.u32 %v1408
  %v1410 = vextract.high.u32 %v1408
  %v1411 = vmul.u32.u64.compose %v1407, %v1402
  %v1412 = vextract.low.u32 %v1411
  %v1413 = vextract.high.u32 %v1411
  %v1414 = vmul.u32 %v1407, %v1398
  %v1415 = vadd.s32 %v1410, %v1412
  %vm1416 = vc.u32 %v1410, %v1412
  %v1417 = vadd.s32 %v1413, 1
  %v1418 = vsel %vm1416, %v1417, %v1413
  %v1419 = vadd.s32 %v1414, %v1418
  %v1420 = vadd.s32 %v1419, 536870912
  %v1421 = vshrl.u32 %v1420, 30
  %v1422 = vshll.u32 %v1421, 30
  %v1423 = vsub.s32 %v1419, %v1422
  %vm1424 = vcmp.lt.s32.totalorder %v1423, 0
  %v1425 = vsub.s32 0, %v1423
  %v1426 = vsel %vm1424, %v1425, %v1423
  %v1427 = vclz %v1426
  %v1428 = vsub.s32 %v1427, 2
  %vm1429 = vcmp.gt.s32.totalorder 0, %v1428
  %v1430 = vsel %vm1429, 0, %v1428
  %v1431 = vsub.s32 32, %v1430
  %v1432 = vshll.u32 %v1423, %v1430
  %v1433 = vshrl.u32 %v1415, %v1431
  %v1434 = vor.u32 %v1432, %v1433
  %v1435 = vsub.s32 4294967266, %v1430
  %v1436 = vadd.s32 %v1435, 127
  %v1437 = vshll.u32 %v1436, 23
  %v1438 = vor.u32 4788187, %v1437
  %v1439 = vand.u32 2147483647, %v1438
  %v1441 = vcvt.s32.f32 %v1434
  %v1442 = vmul.f32 %v1441, %v1439
  %v1443 = vxor.u32 %v1442, 2147483648
  %v1444 = vsel %vm1361, %v1443, %v1442
  %v1445 = vsub.s32 4, %v1421
  %v1446 = vsel %vm1361, %v1445, %v1421
  %v1447 = vsel %vm1360, %v1145, %v1444
  %v1448 = vsel %vm1360, 0, %v1446
  %v1449 = vcosq.f32.pop %v1447
  %v1450 = vsinq.f32.pop %v1447
  %vm1451 = vweird.f32 %v1145
  %v1452 = vadd.s32 %v1448, 3
  %v1453 = vand.u32 %v1452, 3
  %vm1454 = vcmp.lt.s32.totalorder %v1453, 2
  %vm1455 = vcmp.eq.s32.totalorder %v1453, 0
  %v1456 = vxor.u32 %v1450, 2147483648
  %v1457 = vsel %vm1455, %v1449, %v1456
  %vm1458 = vcmp.eq.s32.totalorder %v1453, 2
  %v1459 = vxor.u32 %v1449, 2147483648
  %v1460 = vsel %vm1458, %v1459, %v1450
  %v1461 = vsel %vm1454, %v1457, %v1460
  %v1462 = vsel %vm1451, nan, %v1461
  %v1463 = vand.u32 2147483647, %v1146
  %vm1464 = vcmp.le.f32.partialorder %v1463, 0.7853982
  %vm1465 = vcmp.lt.s32.totalorder %v1146, 0
  %v1466 = vand.u32 %v1146, 2139095040
  %v1467 = vshrl.u32 %v1466, 23
  %v1468 = vsub.s32 %v1467, 127
  %v1469 = vand.u32 2147483647, %v1146
  %v1470 = vand.u32 %v1469, 8388607
  %v1471 = vor.u32 %v1470, 8388608
  %v1472 = vsub.s32 0, %v1471
  %v1473 = vadd.s32 %v1468, 1
  %vm1474 = vcmp.gt.s32.totalorder %v1473, 0
  %v1475 = vsel %vm1474, %v1473, 0
  %v1476 = vshrl.u32 %v1475, 5
  %v1477 = vand.u32 %v1475, 31
  %v1478 = vsub.s32 32, %v1477
  %v1479 = vshrl.u32 683565275, %v1478
  %v1480 = vshll.u32 683565275, %v1477
  %v1481 = vshrl.u32 2475754826, %v1478
  %v1482 = vor.u32 %v1480, %v1481
  %v1483 = vshll.u32 2475754826, %v1477
  %v1484 = vshrl.u32 2131351028, %v1478
  %v1485 = vor.u32 %v1483, %v1484
  %v1486 = vshll.u32 2131351028, %v1477
  %v1487 = vshrl.u32 2102212464, %v1478
  %v1488 = vor.u32 %v1486, %v1487
  %v1489 = vshll.u32 2102212464, %v1477
  %v1490 = vshrl.u32 920167782, %v1478
  %v1491 = vor.u32 %v1489, %v1490
  %v1492 = vshll.u32 920167782, %v1477
  %v1493 = vshrl.u32 1326507024, %v1478
  %v1494 = vor.u32 %v1492, %v1493
  %vm1495 = vcmp.lt.s32.totalorder %v1476, 1
  %vm1496 = vcmp.lt.s32.totalorder %v1476, 2
  %vm1497 = vcmp.lt.s32.totalorder %v1476, 3
  %vm1498 = vcmp.lt.s32.totalorder %v1476, 4
  %v1499 = vsel %vm1495, %v1479, %v1482
  %v1500 = vsel %vm1498, %v1488, 2102212464
  %v1501 = vsel %vm1497, %v1485, %v1500
  %v1502 = vsel %vm1496, %v1499, %v1501
  %v1503 = vsel %vm1495, %v1482, %v1485
  %v1504 = vsel %vm1498, %v1491, 920167782
  %v1505 = vsel %vm1497, %v1488, %v1504
  %v1506 = vsel %vm1496, %v1503, %v1505
  %v1507 = vsel %vm1495, %v1485, %v1488
  %v1508 = vsel %vm1498, %v1494, 1326507024
  %v1509 = vsel %vm1497, %v1491, %v1508
  %v1510 = vsel %vm1496, %v1507, %v1509
  %v1511 = vshll.u32 %v1471, 8
  %v1512 = vmul.u32.u64.compose %v1511, %v1510
  %v1513 = vextract.low.u32 %v1512
  %v1514 = vextract.high.u32 %v1512
  %v1515 = vmul.u32.u64.compose %v1511, %v1506
  %v1516 = vextract.low.u32 %v1515
  %v1517 = vextract.high.u32 %v1515
  %v1518 = vmul.u32 %v1511, %v1502
  %v1519 = vadd.s32 %v1514, %v1516
  %vm1520 = vc.u32 %v1514, %v1516
  %v1521 = vadd.s32 %v1517, 1
  %v1522 = vsel %vm1520, %v1521, %v1517
  %v1523 = vadd.s32 %v1518, %v1522
  %v1524 = vadd.s32 %v1523, 536870912
  %v1525 = vshrl.u32 %v1524, 30
  %v1526 = vshll.u32 %v1525, 30
  %v1527 = vsub.s32 %v1523, %v1526
  %vm1528 = vcmp.lt.s32.totalorder %v1527, 0
  %v1529 = vsub.s32 0, %v1527
  %v1530 = vsel %vm1528, %v1529, %v1527
  %v1531 = vclz %v1530
  %v1532 = vsub.s32 %v1531, 2
  %vm1533 = vcmp.gt.s32.totalorder 0, %v1532
  %v1534 = vsel %vm1533, 0, %v1532
  %v1535 = vsub.s32 32, %v1534
  %v1536 = vshll.u32 %v1527, %v1534
  %v1537 = vshrl.u32 %v1519, %v1535
  %v1538 = vor.u32 %v1536, %v1537
  %v1539 = vsub.s32 4294967266, %v1534
  %v1540 = vadd.s32 %v1539, 127
  %v1541 = vshll.u32 %v1540, 23
  %v1542 = vor.u32 4788187, %v1541
  %v1543 = vand.u32 2147483647, %v1542
  %v1545 = vcvt.s32.f32 %v1538
  %v1546 = vmul.f32 %v1545, %v1543
  %v1547 = vxor.u32 %v1546, 2147483648
  %v1548 = vsel %vm1465, %v1547, %v1546
  %v1549 = vsub.s32 4, %v1525
  %v1550 = vsel %vm1465, %v1549, %v1525
  %v1551 = vsel %vm1464, %v1146, %v1548
  %v1552 = vsel %vm1464, 0, %v1550
  %v1553 = vcosq.f32.pop %v1551
  %v1554 = vsinq.f32.pop %v1551
  %vm1555 = vweird.f32 %v1146
  %v1556 = vadd.s32 %v1552, 3
  %v1557 = vand.u32 %v1556, 3
  %vm1558 = vcmp.lt.s32.totalorder %v1557, 2
  %vm1559 = vcmp.eq.s32.totalorder %v1557, 0
  %v1560 = vxor.u32 %v1554, 2147483648
  %v1561 = vsel %vm1559, %v1553, %v1560
  %vm1562 = vcmp.eq.s32.totalorder %v1557, 2
  %v1563 = vxor.u32 %v1553, 2147483648
  %v1564 = vsel %vm1562, %v1563, %v1554
  %v1565 = vsel %vm1558, %v1561, %v1564
  %v1566 = vsel %vm1555, nan, %v1565
  %v1567 = vand.u32 2147483647, %v1147
  %vm1568 = vcmp.le.f32.partialorder %v1567, 0.7853982
  %vm1569 = vcmp.lt.s32.totalorder %v1147, 0
  %v1570 = vand.u32 %v1147, 2139095040
  %v1571 = vshrl.u32 %v1570, 23
  %v1572 = vsub.s32 %v1571, 127
  %v1573 = vand.u32 2147483647, %v1147
  %v1574 = vand.u32 %v1573, 8388607
  %v1575 = vor.u32 %v1574, 8388608
  %v1576 = vsub.s32 0, %v1575
  %v1577 = vadd.s32 %v1572, 1
  %vm1578 = vcmp.gt.s32.totalorder %v1577, 0
  %v1579 = vsel %vm1578, %v1577, 0
  %v1580 = vshrl.u32 %v1579, 5
  %v1581 = vand.u32 %v1579, 31
  %v1582 = vsub.s32 32, %v1581
  %v1583 = vshrl.u32 683565275, %v1582
  %v1584 = vshll.u32 683565275, %v1581
  %v1585 = vshrl.u32 2475754826, %v1582
  %v1586 = vor.u32 %v1584, %v1585
  %v1587 = vshll.u32 2475754826, %v1581
  %v1588 = vshrl.u32 2131351028, %v1582
  %v1589 = vor.u32 %v1587, %v1588
  %v1590 = vshll.u32 2131351028, %v1581
  %v1591 = vshrl.u32 2102212464, %v1582
  %v1592 = vor.u32 %v1590, %v1591
  %v1593 = vshll.u32 2102212464, %v1581
  %v1594 = vshrl.u32 920167782, %v1582
  %v1595 = vor.u32 %v1593, %v1594
  %v1596 = vshll.u32 920167782, %v1581
  %v1597 = vshrl.u32 1326507024, %v1582
  %v1598 = vor.u32 %v1596, %v1597
  %vm1599 = vcmp.lt.s32.totalorder %v1580, 1
  %vm1600 = vcmp.lt.s32.totalorder %v1580, 2
  %vm1601 = vcmp.lt.s32.totalorder %v1580, 3
  %vm1602 = vcmp.lt.s32.totalorder %v1580, 4
  %v1603 = vsel %vm1599, %v1583, %v1586
  %v1604 = vsel %vm1602, %v1592, 2102212464
  %v1605 = vsel %vm1601, %v1589, %v1604
  %v1606 = vsel %vm1600, %v1603, %v1605
  %v1607 = vsel %vm1599, %v1586, %v1589
  %v1608 = vsel %vm1602, %v1595, 920167782
  %v1609 = vsel %vm1601, %v1592, %v1608
  %v1610 = vsel %vm1600, %v1607, %v1609
  %v1611 = vsel %vm1599, %v1589, %v1592
  %v1612 = vsel %vm1602, %v1598, 1326507024
  %v1613 = vsel %vm1601, %v1595, %v1612
  %v1614 = vsel %vm1600, %v1611, %v1613
  %v1615 = vshll.u32 %v1575, 8
  %v1616 = vmul.u32.u64.compose %v1615, %v1614
  %v1617 = vextract.low.u32 %v1616
  %v1618 = vextract.high.u32 %v1616
  %v1619 = vmul.u32.u64.compose %v1615, %v1610
  %v1620 = vextract.low.u32 %v1619
  %v1621 = vextract.high.u32 %v1619
  %v1622 = vmul.u32 %v1615, %v1606
  %v1623 = vadd.s32 %v1618, %v1620
  %vm1624 = vc.u32 %v1618, %v1620
  %v1625 = vadd.s32 %v1621, 1
  %v1626 = vsel %vm1624, %v1625, %v1621
  %v1627 = vadd.s32 %v1622, %v1626
  %v1628 = vadd.s32 %v1627, 536870912
  %v1629 = vshrl.u32 %v1628, 30
  %v1630 = vshll.u32 %v1629, 30
  %v1631 = vsub.s32 %v1627, %v1630
  %vm1632 = vcmp.lt.s32.totalorder %v1631, 0
  %v1633 = vsub.s32 0, %v1631
  %v1634 = vsel %vm1632, %v1633, %v1631
  %v1635 = vclz %v1634
  %v1636 = vsub.s32 %v1635, 2
  %vm1637 = vcmp.gt.s32.totalorder 0, %v1636
  %v1638 = vsel %vm1637, 0, %v1636
  %v1639 = vsub.s32 32, %v1638
  %v1640 = vshll.u32 %v1631, %v1638
  %v1641 = vshrl.u32 %v1623, %v1639
  %v1642 = vor.u32 %v1640, %v1641
  %v1643 = vsub.s32 4294967266, %v1638
  %v1644 = vadd.s32 %v1643, 127
  %v1645 = vshll.u32 %v1644, 23
  %v1646 = vor.u32 4788187, %v1645
  %v1647 = vand.u32 2147483647, %v1646
  %v1649 = vcvt.s32.f32 %v1642
  %v1650 = vmul.f32 %v1649, %v1647
  %v1651 = vxor.u32 %v1650, 2147483648
  %v1652 = vsel %vm1569, %v1651, %v1650
  %v1653 = vsub.s32 4, %v1629
  %v1654 = vsel %vm1569, %v1653, %v1629
  %v1655 = vsel %vm1568, %v1147, %v1652
  %v1656 = vsel %vm1568, 0, %v1654
  %v1657 = vcosq.f32.pop %v1655
  %v1658 = vsinq.f32.pop %v1655
  %vm1659 = vweird.f32 %v1147
  %v1660 = vadd.s32 %v1656, 3
  %v1661 = vand.u32 %v1660, 3
  %vm1662 = vcmp.lt.s32.totalorder %v1661, 2
  %vm1663 = vcmp.eq.s32.totalorder %v1661, 0
  %v1664 = vxor.u32 %v1658, 2147483648
  %v1665 = vsel %vm1663, %v1657, %v1664
  %vm1666 = vcmp.eq.s32.totalorder %v1661, 2
  %v1667 = vxor.u32 %v1657, 2147483648
  %v1668 = vsel %vm1666, %v1667, %v1658
  %v1669 = vsel %vm1662, %v1665, %v1668
  %v1670 = vsel %vm1659, nan, %v1669
  %v1671 = vand.u32 2147483647, %v1148
  %vm1672 = vcmp.le.f32.partialorder %v1671, 0.7853982
  %vm1673 = vcmp.lt.s32.totalorder %v1148, 0
  %v1674 = vand.u32 %v1148, 2139095040
  %v1675 = vshrl.u32 %v1674, 23
  %v1676 = vsub.s32 %v1675, 127
  %v1677 = vand.u32 2147483647, %v1148
  %v1678 = vand.u32 %v1677, 8388607
  %v1679 = vor.u32 %v1678, 8388608
  %v1680 = vsub.s32 0, %v1679
  %v1681 = vadd.s32 %v1676, 1
  %vm1682 = vcmp.gt.s32.totalorder %v1681, 0
  %v1683 = vsel %vm1682, %v1681, 0
  %v1684 = vshrl.u32 %v1683, 5
  %v1685 = vand.u32 %v1683, 31
  %v1686 = vsub.s32 32, %v1685
  %v1687 = vshrl.u32 683565275, %v1686
  %v1688 = vshll.u32 683565275, %v1685
  %v1689 = vshrl.u32 2475754826, %v1686
  %v1690 = vor.u32 %v1688, %v1689
  %v1691 = vshll.u32 2475754826, %v1685
  %v1692 = vshrl.u32 2131351028, %v1686
  %v1693 = vor.u32 %v1691, %v1692
  %v1694 = vshll.u32 2131351028, %v1685
  %v1695 = vshrl.u32 2102212464, %v1686
  %v1696 = vor.u32 %v1694, %v1695
  %v1697 = vshll.u32 2102212464, %v1685
  %v1698 = vshrl.u32 920167782, %v1686
  %v1699 = vor.u32 %v1697, %v1698
  %v1700 = vshll.u32 920167782, %v1685
  %v1701 = vshrl.u32 1326507024, %v1686
  %v1702 = vor.u32 %v1700, %v1701
  %vm1703 = vcmp.lt.s32.totalorder %v1684, 1
  %vm1704 = vcmp.lt.s32.totalorder %v1684, 2
  %vm1705 = vcmp.lt.s32.totalorder %v1684, 3
  %vm1706 = vcmp.lt.s32.totalorder %v1684, 4
  %v1707 = vsel %vm1703, %v1687, %v1690
  %v1708 = vsel %vm1706, %v1696, 2102212464
  %v1709 = vsel %vm1705, %v1693, %v1708
  %v1710 = vsel %vm1704, %v1707, %v1709
  %v1711 = vsel %vm1703, %v1690, %v1693
  %v1712 = vsel %vm1706, %v1699, 920167782
  %v1713 = vsel %vm1705, %v1696, %v1712
  %v1714 = vsel %vm1704, %v1711, %v1713
  %v1715 = vsel %vm1703, %v1693, %v1696
  %v1716 = vsel %vm1706, %v1702, 1326507024
  %v1717 = vsel %vm1705, %v1699, %v1716
  %v1718 = vsel %vm1704, %v1715, %v1717
  %v1719 = vshll.u32 %v1679, 8
  %v1720 = vmul.u32.u64.compose %v1719, %v1718
  %v1721 = vextract.low.u32 %v1720
  %v1722 = vextract.high.u32 %v1720
  %v1723 = vmul.u32.u64.compose %v1719, %v1714
  %v1724 = vextract.low.u32 %v1723
  %v1725 = vextract.high.u32 %v1723
  %v1726 = vmul.u32 %v1719, %v1710
  %v1727 = vadd.s32 %v1722, %v1724
  %vm1728 = vc.u32 %v1722, %v1724
  %v1729 = vadd.s32 %v1725, 1
  %v1730 = vsel %vm1728, %v1729, %v1725
  %v1731 = vadd.s32 %v1726, %v1730
  %v1732 = vadd.s32 %v1731, 536870912
  %v1733 = vshrl.u32 %v1732, 30
  %v1734 = vshll.u32 %v1733, 30
  %v1735 = vsub.s32 %v1731, %v1734
  %vm1736 = vcmp.lt.s32.totalorder %v1735, 0
  %v1737 = vsub.s32 0, %v1735
  %v1738 = vsel %vm1736, %v1737, %v1735
  %v1739 = vclz %v1738
  %v1740 = vsub.s32 %v1739, 2
  %vm1741 = vcmp.gt.s32.totalorder 0, %v1740
  %v1742 = vsel %vm1741, 0, %v1740
  %v1743 = vsub.s32 32, %v1742
  %v1744 = vshll.u32 %v1735, %v1742
  %v1745 = vshrl.u32 %v1727, %v1743
  %v1746 = vor.u32 %v1744, %v1745
  %v1747 = vsub.s32 4294967266, %v1742
  %v1748 = vadd.s32 %v1747, 127
  %v1749 = vshll.u32 %v1748, 23
  %v1750 = vor.u32 4788187, %v1749
  %v1751 = vand.u32 2147483647, %v1750
  %v1753 = vcvt.s32.f32 %v1746
  %v1754 = vmul.f32 %v1753, %v1751
  %v1755 = vxor.u32 %v1754, 2147483648
  %v1756 = vsel %vm1673, %v1755, %v1754
  %v1757 = vsub.s32 4, %v1733
  %v1758 = vsel %vm1673, %v1757, %v1733
  %v1759 = vsel %vm1672, %v1148, %v1756
  %v1760 = vsel %vm1672, 0, %v1758
  %v1761 = vcosq.f32.pop %v1759
  %v1762 = vsinq.f32.pop %v1759
  %vm1763 = vweird.f32 %v1148
  %v1764 = vadd.s32 %v1760, 3
  %v1765 = vand.u32 %v1764, 3
  %vm1766 = vcmp.lt.s32.totalorder %v1765, 2
  %vm1767 = vcmp.eq.s32.totalorder %v1765, 0
  %v1768 = vxor.u32 %v1762, 2147483648
  %v1769 = vsel %vm1767, %v1761, %v1768
  %vm1770 = vcmp.eq.s32.totalorder %v1765, 2
  %v1771 = vxor.u32 %v1761, 2147483648
  %v1772 = vsel %vm1770, %v1771, %v1762
  %v1773 = vsel %vm1766, %v1769, %v1772
  %v1774 = vsel %vm1763, nan, %v1773
  %v1775 = vand.u32 2147483647, %v1149
  %vm1776 = vcmp.le.f32.partialorder %v1775, 0.7853982
  %vm1777 = vcmp.lt.s32.totalorder %v1149, 0
  %v1778 = vand.u32 %v1149, 2139095040
  %v1779 = vshrl.u32 %v1778, 23
  %v1780 = vsub.s32 %v1779, 127
  %v1781 = vand.u32 2147483647, %v1149
  %v1782 = vand.u32 %v1781, 8388607
  %v1783 = vor.u32 %v1782, 8388608
  %v1784 = vsub.s32 0, %v1783
  %v1785 = vadd.s32 %v1780, 1
  %vm1786 = vcmp.gt.s32.totalorder %v1785, 0
  %v1787 = vsel %vm1786, %v1785, 0
  %v1788 = vshrl.u32 %v1787, 5
  %v1789 = vand.u32 %v1787, 31
  %v1790 = vsub.s32 32, %v1789
  %v1791 = vshrl.u32 683565275, %v1790
  %v1792 = vshll.u32 683565275, %v1789
  %v1793 = vshrl.u32 2475754826, %v1790
  %v1794 = vor.u32 %v1792, %v1793
  %v1795 = vshll.u32 2475754826, %v1789
  %v1796 = vshrl.u32 2131351028, %v1790
  %v1797 = vor.u32 %v1795, %v1796
  %v1798 = vshll.u32 2131351028, %v1789
  %v1799 = vshrl.u32 2102212464, %v1790
  %v1800 = vor.u32 %v1798, %v1799
  %v1801 = vshll.u32 2102212464, %v1789
  %v1802 = vshrl.u32 920167782, %v1790
  %v1803 = vor.u32 %v1801, %v1802
  %v1804 = vshll.u32 920167782, %v1789
  %v1805 = vshrl.u32 1326507024, %v1790
  %v1806 = vor.u32 %v1804, %v1805
  %vm1807 = vcmp.lt.s32.totalorder %v1788, 1
  %vm1808 = vcmp.lt.s32.totalorder %v1788, 2
  %vm1809 = vcmp.lt.s32.totalorder %v1788, 3
  %vm1810 = vcmp.lt.s32.totalorder %v1788, 4
  %v1811 = vsel %vm1807, %v1791, %v1794
  %v1812 = vsel %vm1810, %v1800, 2102212464
  %v1813 = vsel %vm1809, %v1797, %v1812
  %v1814 = vsel %vm1808, %v1811, %v1813
  %v1815 = vsel %vm1807, %v1794, %v1797
  %v1816 = vsel %vm1810, %v1803, 920167782
  %v1817 = vsel %vm1809, %v1800, %v1816
  %v1818 = vsel %vm1808, %v1815, %v1817
  %v1819 = vsel %vm1807, %v1797, %v1800
  %v1820 = vsel %vm1810, %v1806, 1326507024
  %v1821 = vsel %vm1809, %v1803, %v1820
  %v1822 = vsel %vm1808, %v1819, %v1821
  %v1823 = vshll.u32 %v1783, 8
  %v1824 = vmul.u32.u64.compose %v1823, %v1822
  %v1825 = vextract.low.u32 %v1824
  %v1826 = vextract.high.u32 %v1824
  %v1827 = vmul.u32.u64.compose %v1823, %v1818
  %v1828 = vextract.low.u32 %v1827
  %v1829 = vextract.high.u32 %v1827
  %v1830 = vmul.u32 %v1823, %v1814
  %v1831 = vadd.s32 %v1826, %v1828
  %vm1832 = vc.u32 %v1826, %v1828
  %v1833 = vadd.s32 %v1829, 1
  %v1834 = vsel %vm1832, %v1833, %v1829
  %v1835 = vadd.s32 %v1830, %v1834
  %v1836 = vadd.s32 %v1835, 536870912
  %v1837 = vshrl.u32 %v1836, 30
  %v1838 = vshll.u32 %v1837, 30
  %v1839 = vsub.s32 %v1835, %v1838
  %vm1840 = vcmp.lt.s32.totalorder %v1839, 0
  %v1841 = vsub.s32 0, %v1839
  %v1842 = vsel %vm1840, %v1841, %v1839
  %v1843 = vclz %v1842
  %v1844 = vsub.s32 %v1843, 2
  %vm1845 = vcmp.gt.s32.totalorder 0, %v1844
  %v1846 = vsel %vm1845, 0, %v1844
  %v1847 = vsub.s32 32, %v1846
  %v1848 = vshll.u32 %v1839, %v1846
  %v1849 = vshrl.u32 %v1831, %v1847
  %v1850 = vor.u32 %v1848, %v1849
  %v1851 = vsub.s32 4294967266, %v1846
  %v1852 = vadd.s32 %v1851, 127
  %v1853 = vshll.u32 %v1852, 23
  %v1854 = vor.u32 4788187, %v1853
  %v1855 = vand.u32 2147483647, %v1854
  %v1857 = vcvt.s32.f32 %v1850
  %v1858 = vmul.f32 %v1857, %v1855
  %v1859 = vxor.u32 %v1858, 2147483648
  %v1860 = vsel %vm1777, %v1859, %v1858
  %v1861 = vsub.s32 4, %v1837
  %v1862 = vsel %vm1777, %v1861, %v1837
  %v1863 = vsel %vm1776, %v1149, %v1860
  %v1864 = vsel %vm1776, 0, %v1862
  %v1865 = vcosq.f32.pop %v1863
  %v1866 = vsinq.f32.pop %v1863
  %vm1867 = vweird.f32 %v1149
  %v1868 = vadd.s32 %v1864, 3
  %v1869 = vand.u32 %v1868, 3
  %vm1870 = vcmp.lt.s32.totalorder %v1869, 2
  %vm1871 = vcmp.eq.s32.totalorder %v1869, 0
  %v1872 = vxor.u32 %v1866, 2147483648
  %v1873 = vsel %vm1871, %v1865, %v1872
  %vm1874 = vcmp.eq.s32.totalorder %v1869, 2
  %v1875 = vxor.u32 %v1865, 2147483648
  %v1876 = vsel %vm1874, %v1875, %v1866
  %v1877 = vsel %vm1870, %v1873, %v1876
  %v1878 = vsel %vm1867, nan, %v1877
  %v1879 = vand.u32 2147483647, %v1150
  %vm1880 = vcmp.le.f32.partialorder %v1879, 0.7853982
  %vm1881 = vcmp.lt.s32.totalorder %v1150, 0
  %v1882 = vand.u32 %v1150, 2139095040
  %v1883 = vshrl.u32 %v1882, 23
  %v1884 = vsub.s32 %v1883, 127
  %v1885 = vand.u32 2147483647, %v1150
  %v1886 = vand.u32 %v1885, 8388607
  %v1887 = vor.u32 %v1886, 8388608
  %v1888 = vsub.s32 0, %v1887
  %v1889 = vadd.s32 %v1884, 1
  %vm1890 = vcmp.gt.s32.totalorder %v1889, 0
  %v1891 = vsel %vm1890, %v1889, 0
  %v1892 = vshrl.u32 %v1891, 5
  %v1893 = vand.u32 %v1891, 31
  %v1894 = vsub.s32 32, %v1893
  %v1895 = vshrl.u32 683565275, %v1894
  %v1896 = vshll.u32 683565275, %v1893
  %v1897 = vshrl.u32 2475754826, %v1894
  %v1898 = vor.u32 %v1896, %v1897
  %v1899 = vshll.u32 2475754826, %v1893
  %v1900 = vshrl.u32 2131351028, %v1894
  %v1901 = vor.u32 %v1899, %v1900
  %v1902 = vshll.u32 2131351028, %v1893
  %v1903 = vshrl.u32 2102212464, %v1894
  %v1904 = vor.u32 %v1902, %v1903
  %v1905 = vshll.u32 2102212464, %v1893
  %v1906 = vshrl.u32 920167782, %v1894
  %v1907 = vor.u32 %v1905, %v1906
  %v1908 = vshll.u32 920167782, %v1893
  %v1909 = vshrl.u32 1326507024, %v1894
  %v1910 = vor.u32 %v1908, %v1909
  %vm1911 = vcmp.lt.s32.totalorder %v1892, 1
  %vm1912 = vcmp.lt.s32.totalorder %v1892, 2
  %vm1913 = vcmp.lt.s32.totalorder %v1892, 3
  %vm1914 = vcmp.lt.s32.totalorder %v1892, 4
  %v1915 = vsel %vm1911, %v1895, %v1898
  %v1916 = vsel %vm1914, %v1904, 2102212464
  %v1917 = vsel %vm1913, %v1901, %v1916
  %v1918 = vsel %vm1912, %v1915, %v1917
  %v1919 = vsel %vm1911, %v1898, %v1901
  %v1920 = vsel %vm1914, %v1907, 920167782
  %v1921 = vsel %vm1913, %v1904, %v1920
  %v1922 = vsel %vm1912, %v1919, %v1921
  %v1923 = vsel %vm1911, %v1901, %v1904
  %v1924 = vsel %vm1914, %v1910, 1326507024
  %v1925 = vsel %vm1913, %v1907, %v1924
  %v1926 = vsel %vm1912, %v1923, %v1925
  %v1927 = vshll.u32 %v1887, 8
  %v1928 = vmul.u32.u64.compose %v1927, %v1926
  %v1929 = vextract.low.u32 %v1928
  %v1930 = vextract.high.u32 %v1928
  %v1931 = vmul.u32.u64.compose %v1927, %v1922
  %v1932 = vextract.low.u32 %v1931
  %v1933 = vextract.high.u32 %v1931
  %v1934 = vmul.u32 %v1927, %v1918
  %v1935 = vadd.s32 %v1930, %v1932
  %vm1936 = vc.u32 %v1930, %v1932
  %v1937 = vadd.s32 %v1933, 1
  %v1938 = vsel %vm1936, %v1937, %v1933
  %v1939 = vadd.s32 %v1934, %v1938
  %v1940 = vadd.s32 %v1939, 536870912
  %v1941 = vshrl.u32 %v1940, 30
  %v1942 = vshll.u32 %v1941, 30
  %v1943 = vsub.s32 %v1939, %v1942
  %vm1944 = vcmp.lt.s32.totalorder %v1943, 0
  %v1945 = vsub.s32 0, %v1943
  %v1946 = vsel %vm1944, %v1945, %v1943
  %v1947 = vclz %v1946
  %v1948 = vsub.s32 %v1947, 2
  %vm1949 = vcmp.gt.s32.totalorder 0, %v1948
  %v1950 = vsel %vm1949, 0, %v1948
  %v1951 = vsub.s32 32, %v1950
  %v1952 = vshll.u32 %v1943, %v1950
  %v1953 = vshrl.u32 %v1935, %v1951
  %v1954 = vor.u32 %v1952, %v1953
  %v1955 = vsub.s32 4294967266, %v1950
  %v1956 = vadd.s32 %v1955, 127
  %v1957 = vshll.u32 %v1956, 23
  %v1958 = vor.u32 4788187, %v1957
  %v1959 = vand.u32 2147483647, %v1958
  %v1961 = vcvt.s32.f32 %v1954
  %v1962 = vmul.f32 %v1961, %v1959
  %v1963 = vxor.u32 %v1962, 2147483648
  %v1964 = vsel %vm1881, %v1963, %v1962
  %v1965 = vsub.s32 4, %v1941
  %v1966 = vsel %vm1881, %v1965, %v1941
  %v1967 = vsel %vm1880, %v1150, %v1964
  %v1968 = vsel %vm1880, 0, %v1966
  %v1969 = vcosq.f32.pop %v1967
  %v1970 = vsinq.f32.pop %v1967
  %vm1971 = vweird.f32 %v1150
  %v1972 = vadd.s32 %v1968, 3
  %v1973 = vand.u32 %v1972, 3
  %vm1974 = vcmp.lt.s32.totalorder %v1973, 2
  %vm1975 = vcmp.eq.s32.totalorder %v1973, 0
  %v1976 = vxor.u32 %v1970, 2147483648
  %v1977 = vsel %vm1975, %v1969, %v1976
  %vm1978 = vcmp.eq.s32.totalorder %v1973, 2
  %v1979 = vxor.u32 %v1969, 2147483648
  %v1980 = vsel %vm1978, %v1979, %v1970
  %v1981 = vsel %vm1974, %v1977, %v1980
  %v1982 = vsel %vm1971, nan, %v1981
  %v1983 = vld [vmem:[%s5] sm:$0xff]
  %v1984 = vld [vmem:[%s5 + $0x8] sm:$0xff]
  %v1985 = vld [vmem:[%s5 + $0x10] sm:$0xff]
  %v1986 = vld [vmem:[%s5 + $0x18] sm:$0xff]
  %v1987 = vld [vmem:[%s5 + $0x20] sm:$0xff]
  %v1988 = vld [vmem:[%s5 + $0x28] sm:$0xff]
  %v1989 = vld [vmem:[%s5 + $0x30] sm:$0xff]
  %v1990 = vld [vmem:[%s5 + $0x38] sm:$0xff]
  %v1991 = vld [vmem:[%s5 + $0x40] sm:$0xff]
  %v1992 = vld [vmem:[%s5 + $0x48] sm:$0xff]
  %v1993 = vld [vmem:[%s5 + $0x50] sm:$0xff]
  %v1994 = vld [vmem:[%s5 + $0x58] sm:$0xff]
  %v1995 = vld [vmem:[%s6] sm:$0x1]
  %v1997 = vlaneseq
  %v1998 = vshrl.u32 %v1997, 7
  %v1999 = vsub.s32 0, %v1998
  %v2000 = vrot.slane %v1995, %v1999
  %v2003 = vsel %vm1013, %v1254, 0
  %v2006 = vsel %vm1013, %v1358, 0
  %v2009 = vsel %vm1013, %v1462, 0
  %v2012 = vsel %vm1013, %v1566, 0
  %v2015 = vsel %vm1013, %v1670, 0
  %v2018 = vsel %vm1013, %v1774, 0
  %v2021 = vsel %vm1013, %v1878, 0
  %v2024 = vsel %vm1013, %v1982, 0
  %2026 = vmatprep.subr.mxu0 0.0
  %2027 = vmatpush1.msra.mxu0 %v1983
  %2028 = vmatprep.subr.mxu0 0.0
  %2029 = vmatpush1.msra.mxu0 %v1984
  %2030 = vmatprep.subr.mxu0 0.0
  %2031 = vmatpush1.msra.mxu0 %v1985
  %2032 = vmatprep.subr.mxu0 0.0
  %2033 = vmatpush1.msra.mxu0 %v1986
  %2034 = vmatprep.subr.mxu0 0.0
  %2035 = vmatpush1.msra.mxu0 %v1987
  %2036 = vmatprep.subr.mxu0 0.0
  %2037 = vmatpush1.msra.mxu0 %v1988
  %2038 = vmatprep.subr.mxu0 0.0
  %2039 = vmatpush1.msra.mxu0 %v1989
  %2040 = vmatprep.subr.mxu0 0.0
  %2041 = vmatpush1.msra.mxu0 %v1990
  %2042 = vmatprep.subr.mxu0 0.0
  %2043 = vmatpush1.msra.mxu0 %v1991
  %2044 = vmatprep.subr.mxu0 0.0
  %2045 = vmatpush1.msra.mxu0 %v1992
  %2046 = vmatprep.subr.mxu0 0.0
  %2047 = vmatpush1.msra.mxu0 %v1993
  %2048 = vmatprep.subr.mxu0 0.0
  %2049 = vmatpush1.msra.mxu0 %v1994
  %2050 = vmatprep.subr.mxu0 0.0
  %2051 = vmatpush1.msra.mxu0 0.0
  %2052 = vmatprep.subr.mxu0 0.0
  %2053 = vmatpush1.msra.mxu0 0.0
  %2054 = vmatprep.subr.mxu0 0.0
  %2055 = vmatpush1.msra.mxu0 0.0
  %2056 = vmatprep.subr.mxu0 0.0
  %2057 = vmatpush1.msra.mxu0 0.0
  %2058 = vmatprep.subr.mxu0 0.0
  %2059 = vmatpush1.msra.mxu0 0.0
  %2060 = vmatprep.subr.mxu0 0.0
  %2061 = vmatpush1.msra.mxu0 0.0
  %2062 = vmatprep.subr.mxu0 0.0
  %2063 = vmatpush1.msra.mxu0 0.0
  %2064 = vmatprep.subr.mxu0 0.0
  %2065 = vmatpush1.msra.mxu0 0.0
  %2066 = vmatprep.subr.mxu0 0.0
  %2067 = vmatpush1.msra.mxu0 0.0
  %2068 = vmatprep.subr.mxu0 0.0
  %2069 = vmatpush1.msra.mxu0 0.0
  %2070 = vmatprep.subr.mxu0 0.0
  %2071 = vmatpush1.msra.mxu0 0.0
  %2072 = vmatprep.subr.mxu0 0.0
  %2073 = vmatpush1.msra.mxu0 0.0
  %2074 = vmatprep.subr.mxu0 0.0
  %2075 = vmatpush1.msra.mxu0 0.0
  %2076 = vmatprep.subr.mxu0 0.0
  %2077 = vmatpush1.msra.mxu0 0.0
  %2078 = vmatprep.subr.mxu0 0.0
  %2079 = vmatpush1.msra.mxu0 0.0
  %2080 = vmatprep.subr.mxu0 0.0
  %2081 = vmatpush1.msra.mxu0 0.0
  %2082 = vmatprep.subr.mxu0 0.0
  %2083 = vmatpush1.msra.mxu0 0.0
  %2084 = vmatprep.subr.mxu0 0.0
  %2085 = vmatpush1.msra.mxu0 0.0
  %2086 = vmatprep.subr.mxu0 0.0
  %2087 = vmatpush1.msra.mxu0 0.0
  %2088 = vmatprep.subr.mxu0 0.0
  %2089 = vmatpush1.msra.mxu0 0.0
  %2090 = vmatprep.mubr.f32.mxu0 0.0
  %2091 = vmatmul.mubr.f32.gmra.mrb[0].mxu0 %v2003
  %v2092 = vpop.f32.mrb[0].mxu0
  %v2093 = vadd.f32 %v2000, %v2092
  %v2094 = vpop.f32.mrb[0].mxu0
  %2095 = vmatprep.mubr.f32.mxu0 0.0
  %2096 = vmatmul.mubr.f32.gmra.mrb[0].mxu0 %v2006
  %v2097 = vpop.f32.mrb[0].mxu0
  %v2098 = vadd.f32 %v2000, %v2097
  %v2099 = vpop.f32.mrb[0].mxu0
  %2100 = vmatprep.mubr.f32.mxu0 0.0
  %2101 = vmatmul.mubr.f32.gmra.mrb[0].mxu0 %v2009
  %v2102 = vpop.f32.mrb[0].mxu0
  %v2103 = vadd.f32 %v2000, %v2102
  %v2104 = vpop.f32.mrb[0].mxu0
  %2105 = vmatprep.mubr.f32.mxu0 0.0
  %2106 = vmatmul.mubr.f32.gmra.mrb[0].mxu0 %v2012
  %v2107 = vpop.f32.mrb[0].mxu0
  %v2108 = vadd.f32 %v2000, %v2107
  %v2109 = vpop.f32.mrb[0].mxu0
  %2110 = vmatprep.mubr.f32.mxu0 0.0
  %2111 = vmatmul.mubr.f32.gmra.mrb[0].mxu0 %v2015
  %v2112 = vpop.f32.mrb[0].mxu0
  %v2113 = vadd.f32 %v2000, %v2112
  %v2114 = vpop.f32.mrb[0].mxu0
  %2115 = vmatprep.mubr.f32.mxu0 0.0
  %2116 = vmatmul.mubr.f32.gmra.mrb[0].mxu0 %v2018
  %v2117 = vpop.f32.mrb[0].mxu0
  %v2118 = vadd.f32 %v2000, %v2117
  %v2119 = vpop.f32.mrb[0].mxu0
  %2120 = vmatprep.mubr.f32.mxu0 0.0
  %2121 = vmatmul.mubr.f32.gmra.mrb[0].mxu0 %v2021
  %v2122 = vpop.f32.mrb[0].mxu0
  %v2123 = vadd.f32 %v2000, %v2122
  %v2124 = vpop.f32.mrb[0].mxu0
  %2125 = vmatprep.mubr.f32.mxu0 0.0
  %2126 = vmatmul.mubr.f32.gmra.mrb[0].mxu0 %v2024
  %v2127 = vpop.f32.mrb[0].mxu0
  %v2128 = vadd.f32 %v2000, %v2127
  %v2129 = vpop.f32.mrb[0].mxu0
  %2130 = vdwg.mxu0
  %vm2131 = vcmask 97280
  %2132 = vst.msk [vmem:[%s7] sm:$0xff] %vm2131, %v2093
  %2133 = vst.msk [vmem:[%s7 + $0x8] sm:$0xff] %vm2131, %v2098
  %2134 = vst.msk [vmem:[%s7 + $0x10] sm:$0xff] %vm2131, %v2103
  %2135 = vst.msk [vmem:[%s7 + $0x18] sm:$0xff] %vm2131, %v2108
  %2136 = vst.msk [vmem:[%s7 + $0x20] sm:$0xff] %vm2131, %v2113
  %2137 = vst.msk [vmem:[%s7 + $0x28] sm:$0xff] %vm2131, %v2118
  %2138 = vst.msk [vmem:[%s7 + $0x30] sm:$0xff] %vm2131, %v2123
  %2139 = vst.msk [vmem:[%s7 + $0x38] sm:$0xff] %vm2131, %v2128
  // Predicated region
  $region30: #{tpu_custom_call.1} parent=0 // pred_check
    _
  $region31: #{tpu_custom_call.1} parent=0 // pred_check_branch
    %2141 = sbr.rel (0) target = $region33
  $region32: #{tpu_custom_call.1} parent=0 // pred_region
    _
  $region33: #{tpu_custom_call.1} parent=0 // pred_fallthru
    _
  // Predicated region
  $region34: #{tpu_custom_call.1} parent=0 // pred_check
    _
  $region35: #{tpu_custom_call.1} parent=0 // pred_check_branch
    %2143 = sbr.rel (0) target = $region37
  $region36: #{tpu_custom_call.1} parent=0 // pred_region
    _
  $region37: #{tpu_custom_call.1} parent=0 // pred_fallthru
    _

</llo_original>
